<compile_context>
chip_gen: v6e
topology: v6e:2x2x1
jax: 0.10.0
libtpu: 0.0.40
codegen_flags: <defaults>
</compile_context>

<pallas_src>
import functools

import jax
import jax.numpy as jnp
from jax.experimental import pallas as pl
from jax.experimental.pallas import tpu as pltpu

EPS = 1e-5
EXPANSION = 4  # Bottleneck block expansion


# ----------------------------------------------------------------------------
# Per-generation tiling configuration
# ----------------------------------------------------------------------------
def _platform_tiles():
    try:
        kind = jax.devices()[0].device_kind.lower()
    except Exception:
        kind = ""
    if "v5 lite" in kind or "v5e" in kind or "v5lite" in kind:
        # v5e: 4x(128x128) MXU, 16 MiB default scoped VMEM -> smaller tiles.
        return 256, 128, 256
    # v6e / v7x: 2x(256x256) MXU.
    return 512, 256, 512


_TM_MAX, _TN_MAX, _TK_MAX = _platform_tiles()
# Safe everywhere: v5e/v6e have 128 MiB physical VMEM, v7x has 64 MiB.
_VMEM_LIMIT = 48 * 1024 * 1024


def _round_up(x, m):
    return ((x + m - 1) // m) * m


def _pick_tile_rows(m):
    """Row (sublane) tile: biggest tile <= _TM_MAX; pad M up to a multiple."""
    tm = min(_TM_MAX, _round_up(m, 8))
    return tm, _round_up(m, tm)


def _pick_tile_lanes(d, target):
    """Lane tile: largest multiple of 128 <= target dividing round_up(d,128)."""
    padded = _round_up(d, 128)
    best = 128
    t = 128
    while t <= min(target, padded):
        if padded % t == 0:
            best = t
        t += 128
    return best, padded


# ----------------------------------------------------------------------------
# Pallas kernels
# ----------------------------------------------------------------------------
def _matmul_stats_kernel(x_ref, w_ref, o_ref, stats_ref, acc_ref):
    """Tiled bf16 matmul with f32 accumulation.  On the last K step, write the
    f32 conv-output tile plus per-channel partial sum / sum-of-squares (rows 0
    and 1 of an 8-row stats block) used for BatchNorm batch statistics."""
    k = pl.program_id(2)

    @pl.when(k == 0)
    def _():
        acc_ref[...] = jnp.zeros_like(acc_ref)

    acc_ref[...] += jnp.dot(x_ref[...], w_ref[...],
                            preferred_element_type=jnp.float32)

    @pl.when(k == pl.num_programs(2) - 1)
    def _():
        acc = acc_ref[...]
        o_ref[...] = acc.astype(o_ref.dtype)
        colsum = jnp.sum(acc, axis=0, keepdims=True)        # (1, tn)
        colsq = jnp.sum(acc * acc, axis=0, keepdims=True)   # (1, tn)
        rows = jax.lax.broadcasted_iota(jnp.int32, stats_ref.shape, 0)
        stats_ref[...] = jnp.where(rows == 0, colsum,
                                   jnp.where(rows == 1, colsq, 0.0))


def _bn_act_kernel(y_ref, scale_ref, shift_ref, o_ref, *, relu):
    out = y_ref[...] * scale_ref[...] + shift_ref[...]
    if relu:
        out = jnp.maximum(out, 0.0)
    o_ref[...] = out.astype(o_ref.dtype)


def _bn_act_res_kernel(y_ref, scale_ref, shift_ref, r_ref, o_ref, *, relu):
    out = (y_ref[...] * scale_ref[...] + shift_ref[...]
           + r_ref[...].astype(jnp.float32))
    if relu:
        out = jnp.maximum(out, 0.0)
    o_ref[...] = out.astype(o_ref.dtype)


# ----------------------------------------------------------------------------
# pallas_call builders (traced inside the jitted conv+bn)
# ----------------------------------------------------------------------------
def _matmul_stats(cols, w2, tm, tn, tk):
    Mp, Kp = cols.shape
    Cp = w2.shape[1]
    num_m, num_n, num_k = Mp // tm, Cp // tn, Kp // tk
    return pl.pallas_call(
        _matmul_stats_kernel,
        out_shape=(jax.ShapeDtypeStruct((Mp, Cp), jnp.float32),
                   jax.ShapeDtypeStruct((num_m * 8, Cp), jnp.float32)),
        grid_spec=pltpu.PrefetchScalarGridSpec(
            num_scalar_prefetch=0,
            grid=(num_m, num_n, num_k),
            in_specs=[pl.BlockSpec((tm, tk), lambda i, j, k: (i, k)),
                      pl.BlockSpec((tk, tn), lambda i, j, k: (k, j))],
            out_specs=[pl.BlockSpec((tm, tn), lambda i, j, k: (i, j)),
                       pl.BlockSpec((8, tn), lambda i, j, k: (i, j))],
            scratch_shapes=[pltpu.VMEM((tm, tn), jnp.float32)]),
        compiler_params=pltpu.CompilerParams(
            dimension_semantics=("parallel", "parallel", "arbitrary"),
            vmem_limit_bytes=_VMEM_LIMIT),
        cost_estimate=pl.CostEstimate(
            flops=2 * Mp * Kp * Cp,
            transcendentals=0,
            bytes_accessed=Mp * Kp * 2 + Kp * Cp * 2 + Mp * Cp * 4),
    )(cols, w2)


def _bn_act(y, scale, shift, res, tm, tn, relu):
    Mp, Cp = y.shape
    num_m, num_n = Mp // tm, Cp // tn
    in_specs = [pl.BlockSpec((tm, tn), lambda i, j: (i, j)),
                pl.BlockSpec((1, tn), lambda i, j: (0, j)),
                pl.BlockSpec((1, tn), lambda i, j: (0, j))]
    args = [y, scale, shift]
    if res is not None:
        in_specs.append(pl.BlockSpec((tm, tn), lambda i, j: (i, j)))
        args.append(res)
        kern = functools.partial(_bn_act_res_kernel, relu=relu)
    else:
        kern = functools.partial(_bn_act_kernel, relu=relu)
    return pl.pallas_call(
        kern,
        out_shape=jax.ShapeDtypeStruct((Mp, Cp), jnp.bfloat16),
        grid_spec=pltpu.PrefetchScalarGridSpec(
            num_scalar_prefetch=0,
            grid=(num_m, num_n),
            in_specs=in_specs,
            out_specs=pl.BlockSpec((tm, tn), lambda i, j: (i, j))),
        compiler_params=pltpu.CompilerParams(
            dimension_semantics=("parallel", "parallel"),
            vmem_limit_bytes=_VMEM_LIMIT),
    )(*args)


# ----------------------------------------------------------------------------
# im2col + fused conv->BN->(residual)->ReLU wrapper
# ----------------------------------------------------------------------------
def _im2col(x, kh, kw, stride, padding, dilation):
    """(N,H,W,C) -> ((M, kh*kw*C) patch matrix, (N, Ho, Wo))."""
    N, H, W, C = x.shape
    if kh == 1 and kw == 1 and padding == 0:
        if stride != 1:
            x = x[:, ::stride, ::stride, :]
        _, Ho, Wo, _ = x.shape
        return x.reshape(N * Ho * Wo, C), (N, Ho, Wo)
    xp = jnp.pad(x, ((0, 0), (padding, padding), (padding, padding), (0, 0)))
    Hp, Wp = H + 2 * padding, W + 2 * padding
    Ho = (Hp - dilation * (kh - 1) - 1) // stride + 1
    Wo = (Wp - dilation * (kw - 1) - 1) // stride + 1
    pats = []
    for i in range(kh):
        for j in range(kw):
            sl = jax.lax.slice(
                xp,
                (0, i * dilation, j * dilation, 0),
                (N, i * dilation + (Ho - 1) * stride + 1,
                 j * dilation + (Wo - 1) * stride + 1, C),
                (1, stride, stride, 1))
            pats.append(sl.reshape(N * Ho * Wo, C))
    return jnp.concatenate(pats, axis=-1), (N, Ho, Wo)


@functools.partial(jax.jit,
                   static_argnames=("stride", "padding", "dilation", "relu"))
def _conv_bn(x, w, gamma, beta, residual, *, stride, padding, dilation, relu):
    kh, kw, cin, cout = w.shape
    cols, (N, Ho, Wo) = _im2col(x.astype(jnp.bfloat16), kh, kw,
                                stride, padding, dilation)
    M, K = cols.shape

    tm, Mp = _pick_tile_rows(M)
    tk, Kp = _pick_tile_lanes(K, _TK_MAX)
    tn, Cp = _pick_tile_lanes(cout, _TN_MAX)

    cols = jnp.pad(cols, ((0, Mp - M), (0, Kp - K)))
    w2 = jnp.pad(w.reshape(kh * kw * cin, cout).astype(jnp.bfloat16),
                 ((0, Kp - K), (0, Cp - cout)))

    # Pass 1: tiled matmul + per-tile channel sum / sum-of-squares partials.
    y, stats = _matmul_stats(cols, w2, tm, tn, tk)

    # Tiny cross-tile reduction -> training-mode batch statistics (biased var,
    # divided by the true M, so zero-padded rows are exact).
    colsum = jnp.sum(stats[0::8, :], axis=0)
    colsq = jnp.sum(stats[1::8, :], axis=0)
    mean = colsum / M
    var = jnp.maximum(colsq / M - mean * mean, 0.0)
    rstd = jax.lax.rsqrt(var + EPS)
    gamma_p = jnp.pad(gamma.astype(jnp.float32), (0, Cp - cout))
    beta_p = jnp.pad(beta.astype(jnp.float32), (0, Cp - cout))
    scale = (gamma_p * rstd).reshape(1, Cp)
    shift = (beta_p - mean * gamma_p * rstd).reshape(1, Cp)

    res = None
    if residual is not None:
        res = residual.astype(jnp.bfloat16).reshape(N * Ho * Wo, cout)
        res = jnp.pad(res, ((0, Mp - M), (0, Cp - cout)))

    # Pass 2: tiled BN apply (+ residual) (+ ReLU), bf16 activation output.
    out = _bn_act(y, scale, shift, res, tm, tn, relu)
    return out[:M, :cout].reshape(N, Ho, Wo, cout)


def conv_bn(x, w, gamma, beta, *, stride=1, padding=0, dilation=1,
            relu=True, residual=None):
    return _conv_bn(x, w, gamma, beta, residual, stride=stride,
                    padding=padding, dilation=dilation, relu=relu)


@jax.jit
def maxpool_3x3_s2(x):
    # Mem-bound window max; XLA reduce_window reads the feature map once
    # instead of materializing the 9 shifted windows (perf review).
    return jax.lax.reduce_window(
        x, jnp.asarray(-jnp.inf, x.dtype), jax.lax.max,
        window_dimensions=(1, 3, 3, 1),
        window_strides=(1, 2, 2, 1),
        padding=((0, 0), (1, 1), (1, 1), (0, 0)))


# ----------------------------------------------------------------------------
# Deterministic parameter construction (synthetic weights, PyTorch-shaped)
# ----------------------------------------------------------------------------
class _KeyGen:
    def __init__(self, key):
        self._key = key

    def __call__(self):
        self._key, k = jax.random.split(self._key)
        return k


def _conv_w(key, kh, kw, cin, cout):
    fan_in = kh * kw * cin
    return jax.random.normal(key, (kh, kw, cin, cout), jnp.float32) * (2.0 / fan_in) ** 0.5


def _bn(c):
    # PyTorch BatchNorm2d default init: weight=1, bias=0.
    return jnp.ones((c,), jnp.float32), jnp.zeros((c,), jnp.float32)


def _make_bottleneck_params(kg, inplanes, planes, stride, rate, with_downsample):
    p = {
        "w1": _conv_w(kg(), 1, 1, inplanes, planes), "bn1": _bn(planes),
        "w2": _conv_w(kg(), 3, 3, planes, planes), "bn2": _bn(planes),
        "w3": _conv_w(kg(), 1, 1, planes, planes * EXPANSION),
        "bn3": _bn(planes * EXPANSION),
        "stride": stride, "rate": rate,
    }
    if with_downsample:
        p["wd"] = _conv_w(kg(), 1, 1, inplanes, planes * EXPANSION)
        p["bnd"] = _bn(planes * EXPANSION)
    return p


def make_resnet_params(seed=0, layers=(3, 4, 23, 3)):
    kg = _KeyGen(jax.random.PRNGKey(seed))
    params = {"conv1": _conv_w(kg(), 7, 7, 3, 64), "bn1": _bn(64)}
    inplanes = 64

    def make_layer(planes, blocks, stride, rate):
        nonlocal inplanes
        blist = []
        ds = (stride != 1) or (inplanes != planes * EXPANSION)
        blist.append(_make_bottleneck_params(kg, inplanes, planes, stride, rate, ds))
        inplanes = planes * EXPANSION
        for _ in range(1, blocks):
            blist.append(_make_bottleneck_params(kg, inplanes, planes, 1, 1, False))
        return blist

    def make_mg_layer(planes, stride, rate, blocks=(1, 2, 4)):
        nonlocal inplanes
        blist = []
        ds = (stride != 1) or (inplanes != planes * EXPANSION)
        blist.append(_make_bottleneck_params(kg, inplanes, planes, stride,
                                             blocks[0] * rate, ds))
        inplanes = planes * EXPANSION
        for i in range(1, len(blocks)):
            blist.append(_make_bottleneck_params(kg, inplanes, planes, 1,
                                                 blocks[i] * rate, False))
        return blist

    params["layer1"] = make_layer(64, layers[0], 1, 1)
    params["layer2"] = make_layer(128, layers[1], 2, 1)
    params["layer3"] = make_layer(256, layers[2], 2, 1)
    params["layer4"] = make_mg_layer(512, 1, 2)
    return params


# ----------------------------------------------------------------------------
# Forward pass
# ----------------------------------------------------------------------------
@functools.partial(jax.jit, static_argnames=("stride", "rate", "has_ds"))
def _bottleneck_jit(x, p, *, stride, rate, has_ds):
    residual = x
    if has_ds:
        residual = conv_bn(x, p["wd"], *p["bnd"], stride=stride, padding=0,
                           relu=False)
    out = conv_bn(x, p["w1"], *p["bn1"], relu=True)
    out = conv_bn(out, p["w2"], *p["bn2"], stride=stride, padding=rate,
                  dilation=rate, relu=True)
    # conv3 -> bn3 -> (+ residual) -> relu, residual add fused in kernel 2.
    out = conv_bn(out, p["w3"], *p["bn3"], relu=True, residual=residual)
    return out


def _bottleneck_forward(x, p):
    arrs = {k: v for k, v in p.items() if k not in ("stride", "rate")}
    return _bottleneck_jit(x, arrs, stride=p["stride"], rate=p["rate"],
                           has_ds="wd" in p)


def atrous_resnet101_forward(x_nchw, params):
    x = jnp.transpose(x_nchw, (0, 2, 3, 1))  # NCHW -> NHWC
    out = conv_bn(x, params["conv1"], *params["bn1"], stride=2, padding=3, relu=True)
    out = maxpool_3x3_s2(out)
    for p in params["layer1"]:
        out = _bottleneck_forward(out, p)
    conv1_feat = out
    for name in ("layer2", "layer3", "layer4"):
        for p in params[name]:
            out = _bottleneck_forward(out, p)
    # return in PyTorch NCHW convention, matching (out, conv1)
    out = jnp.transpose(out, (0, 3, 1, 2)).astype(jnp.float32)
    low = jnp.transpose(conv1_feat, (0, 3, 1, 2)).astype(jnp.float32)
    return out, low


if __name__ == "__main__":
    key = jax.random.PRNGKey(0)
    x = jax.random.normal(key, (2, 3, 32, 32), jnp.float32)  # NCHW like PyTorch
    params = make_resnet_params(seed=0, layers=(3, 4, 23, 3))

    out, low = atrous_resnet101_forward(x, params)
    out = jax.block_until_ready(out)
    low = jax.block_until_ready(low)

    assert out.shape == (2, 2048, 2, 2), out.shape   # layer4 output
    assert low.shape == (2, 256, 8, 8), low.shape    # layer1 ("conv1") output
    assert jnp.isfinite(out).all() and jnp.isfinite(low).all()
    print("KERNEL_OK")
</pallas_src>

<mosaic_0001>
module attributes {stable_mosaic.version = 11 : i64} {
  func.func @_matmul_stats_kernel(%arg0: i32, %arg1: i32, %arg2: i32, %arg3: memref<512x256xbf16, #tpu.memory_space<vmem>>, %arg4: memref<256x128xbf16, #tpu.memory_space<vmem>>, %arg5: memref<512x128xf32, #tpu.memory_space<vmem>>, %arg6: memref<8x128xf32, #tpu.memory_space<vmem>>, %arg7: memref<512x128xf32, #tpu.memory_space<vmem>>) attributes {dimension_semantics = [#tpu.dimension_semantics<parallel>, #tpu.dimension_semantics<parallel>, #tpu.dimension_semantics<arbitrary>], iteration_bounds = array<i64: 1, 1, 1>, scalar_prefetch = 0 : i64, scratch_operands = 1 : i64, tpu.core_type = #tpu.core_type<tc>, window_params = [{transform_indices = @transform_0, window_bounds = array<i64: 512, 256>}, {transform_indices = @transform_1, window_bounds = array<i64: 256, 128>}, {transform_indices = @transform_2, window_bounds = array<i64: 512, 128>}, {transform_indices = @transform_3, window_bounds = array<i64: 8, 128>}]} {
    %c0_i32 = arith.constant 0 : i32
    %0 = arith.cmpi eq, %arg2, %c0_i32 : i32
    %1 = arith.extui %0 : i1 to i32
    %c0_i32_0 = arith.constant 0 : i32
    %2 = arith.cmpi ne, %1, %c0_i32_0 : i32
    scf.if %2 {
      %cst_10 = arith.constant 0.000000e+00 : f32
      %12 = vector.broadcast %cst_10 : f32 to vector<512x128xf32>
      %c0_11 = arith.constant 0 : index
      %c0_12 = arith.constant 0 : index
      %13 = vector.load %arg7[%c0_11, %c0_12] : memref<512x128xf32, #tpu.memory_space<vmem>>, vector<512x128xf32>
      tpu.vector_store %arg7[%c0_11, %c0_12], %12 {strides = array<i32>} : memref<512x128xf32, #tpu.memory_space<vmem>>, vector<512x128xf32>,
    } else {
    }
    %c0 = arith.constant 0 : index
    %c0_1 = arith.constant 0 : index
    %3 = vector.load %arg7[%c0, %c0_1] : memref<512x128xf32, #tpu.memory_space<vmem>>, vector<512x128xf32>
    %c0_2 = arith.constant 0 : index
    %c0_3 = arith.constant 0 : index
    %4 = vector.load %arg3[%c0_2, %c0_3] : memref<512x256xbf16, #tpu.memory_space<vmem>>, vector<512x256xbf16>
    %c0_4 = arith.constant 0 : index
    %c0_5 = arith.constant 0 : index
    %5 = vector.load %arg4[%c0_4, %c0_5] : memref<256x128xbf16, #tpu.memory_space<vmem>>, vector<256x128xbf16>
    %cst = arith.constant dense<0.000000e+00> : vector<512x128xf32>
    %6 = tpu.matmul %4, %5, %cst {dimension_numbers = #tpu.dot_dimension_numbers<[1], [0], [0], [1], [0, 0, 1, 1], [], []>} : vector<512x256xbf16>, vector<256x128xbf16>, vector<512x128xf32> -> vector<512x128xf32>
    %7 = arith.addf %3, %6 : vector<512x128xf32>
    %c0_6 = arith.constant 0 : index
    %c0_7 = arith.constant 0 : index
    %8 = vector.load %arg7[%c0_6, %c0_7] : memref<512x128xf32, #tpu.memory_space<vmem>>, vector<512x128xf32>
    tpu.vector_store %arg7[%c0_6, %c0_7], %7 {strides = array<i32>} : memref<512x128xf32, #tpu.memory_space<vmem>>, vector<512x128xf32>,
    %c0_i32_8 = arith.constant 0 : i32
    %9 = arith.cmpi eq, %arg2, %c0_i32_8 : i32
    %10 = arith.extui %9 : i1 to i32
    %c0_i32_9 = arith.constant 0 : i32
    %11 = arith.cmpi ne, %10, %c0_i32_9 : i32
    scf.if %11 {
      %c0_10 = arith.constant 0 : index
      %c0_11 = arith.constant 0 : index
      %12 = vector.load %arg7[%c0_10, %c0_11] : memref<512x128xf32, #tpu.memory_space<vmem>>, vector<512x128xf32>
      %c0_12 = arith.constant 0 : index
      %c0_13 = arith.constant 0 : index
      %13 = vector.load %arg5[%c0_12, %c0_13] : memref<512x128xf32, #tpu.memory_space<vmem>>, vector<512x128xf32>
      tpu.vector_store %arg5[%c0_12, %c0_13], %12 {strides = array<i32>} : memref<512x128xf32, #tpu.memory_space<vmem>>, vector<512x128xf32>,
      %cst_14 = arith.constant dense<0.000000e+00> : vector<128xf32>
      %14 = vector.multi_reduction <add>, %12, %cst_14 [0] : vector<512x128xf32> to vector<128xf32>
      %15 = vector.shape_cast %14 : vector<128xf32> to vector<1x128xf32>
      %16 = arith.mulf %12, %12 : vector<512x128xf32>
      %cst_15 = arith.constant dense<0.000000e+00> : vector<128xf32>
      %17 = vector.multi_reduction <add>, %16, %cst_15 [0] : vector<512x128xf32> to vector<128xf32>
      %18 = vector.shape_cast %17 : vector<128xf32> to vector<1x128xf32>
      %19 = tpu.iota {dimensions = array<i32: 0>} : vector<8x128xi32>
      %c0_i32_16 = arith.constant 0 : i32
      %20 = vector.broadcast %c0_i32_16 : i32 to vector<8x128xi32>
      %21 = arith.cmpi eq, %19, %20 : vector<8x128xi32>
      %c1_i32 = arith.constant 1 : i32
      %22 = vector.broadcast %c1_i32 : i32 to vector<8x128xi32>
      %23 = arith.cmpi eq, %19, %22 : vector<8x128xi32>
      %cst_17 = arith.constant 0.000000e+00 : f32
      %24 = vector.shape_cast %18 : vector<1x128xf32> to vector<1x128xf32>
      %25 = vector.broadcast %24 : vector<1x128xf32> to vector<8x128xf32>
      %26 = vector.broadcast %cst_17 : f32 to vector<8x128xf32>
      %27 = arith.select %23, %25, %26 : vector<8x128xi1>, vector<8x128xf32>
      %28 = vector.shape_cast %15 : vector<1x128xf32> to vector<1x128xf32>
      %29 = vector.broadcast %28 : vector<1x128xf32> to vector<8x128xf32>
      %30 = arith.select %21, %29, %27 : vector<8x128xi1>, vector<8x128xf32>
      %c0_18 = arith.constant 0 : index
      %c0_19 = arith.constant 0 : index
      %31 = vector.load %arg6[%c0_18, %c0_19] : memref<8x128xf32, #tpu.memory_space<vmem>>, vector<8x128xf32>
      tpu.vector_store %arg6[%c0_18, %c0_19], %30 {strides = array<i32>} : memref<8x128xf32, #tpu.memory_space<vmem>>, vector<8x128xf32>,
    } else {
    }
    return
  }
  func.func @transform_0(%arg0: i32, %arg1: i32, %arg2: i32) -> (i32, i32) {
    %c0_i32 = arith.constant 0 : i32
    return %arg0, %arg2 : i32, i32
  }
  func.func @transform_1(%arg0: i32, %arg1: i32, %arg2: i32) -> (i32, i32) {
    %c0_i32 = arith.constant 0 : i32
    return %arg2, %arg1 : i32, i32
  }
  func.func @transform_2(%arg0: i32, %arg1: i32, %arg2: i32) -> (i32, i32) {
    %c0_i32 = arith.constant 0 : i32
    return %arg0, %arg1 : i32, i32
  }
  func.func @transform_3(%arg0: i32, %arg1: i32, %arg2: i32) -> (i32, i32) {
    %c0_i32 = arith.constant 0 : i32
    return %arg0, %arg1 : i32, i32
  }
}

module attributes {stable_mosaic.version = 11 : i64} {
  func.func @_bn_act_kernel(%arg0: i32, %arg1: i32, %arg2: memref<512x128xf32, #tpu.memory_space<vmem>>, %arg3: memref<1x128xf32, #tpu.memory_space<vmem>>, %arg4: memref<1x128xf32, #tpu.memory_space<vmem>>, %arg5: memref<512x128xbf16, #tpu.memory_space<vmem>>) attributes {dimension_semantics = [#tpu.dimension_semantics<parallel>, #tpu.dimension_semantics<parallel>], iteration_bounds = array<i64: 1, 1>, scalar_prefetch = 0 : i64, scratch_operands = 0 : i64, tpu.core_type = #tpu.core_type<tc>, window_params = [{transform_indices = @transform_0, window_bounds = array<i64: 512, 128>}, {transform_indices = @transform_1, window_bounds = array<i64: 1, 128>}, {transform_indices = @transform_2, window_bounds = array<i64: 1, 128>}, {transform_indices = @transform_3, window_bounds = array<i64: 512, 128>}]} {
    %c0 = arith.constant 0 : index
    %c0_0 = arith.constant 0 : index
    %0 = vector.load %arg2[%c0, %c0_0] : memref<512x128xf32, #tpu.memory_space<vmem>>, vector<512x128xf32>
    %c0_1 = arith.constant 0 : index
    %c0_2 = arith.constant 0 : index
    %1 = vector.load %arg3[%c0_1, %c0_2] : memref<1x128xf32, #tpu.memory_space<vmem>>, vector<1x128xf32>
    %2 = vector.broadcast %1 : vector<1x128xf32> to vector<512x128xf32>
    %3 = arith.mulf %0, %2 : vector<512x128xf32>
    %c0_3 = arith.constant 0 : index
    %c0_4 = arith.constant 0 : index
    %4 = vector.load %arg4[%c0_3, %c0_4] : memref<1x128xf32, #tpu.memory_space<vmem>>, vector<1x128xf32>
    %5 = vector.broadcast %4 : vector<1x128xf32> to vector<512x128xf32>
    %6 = arith.addf %3, %5 : vector<512x128xf32>
    %cst = arith.constant 0.000000e+00 : f32
    %7 = vector.broadcast %cst : f32 to vector<512x128xf32>
    %8 = arith.maximumf %6, %7 : vector<512x128xf32>
    %9 = arith.truncf %8 : vector<512x128xf32> to vector<512x128xbf16>
    %c0_5 = arith.constant 0 : index
    %c0_6 = arith.constant 0 : index
    %10 = vector.load %arg5[%c0_5, %c0_6] : memref<512x128xbf16, #tpu.memory_space<vmem>>, vector<512x128xbf16>
    tpu.vector_store %arg5[%c0_5, %c0_6], %9 {strides = array<i32>} : memref<512x128xbf16, #tpu.memory_space<vmem>>, vector<512x128xbf16>,
    return
  }
  func.func @transform_0(%arg0: i32, %arg1: i32) -> (i32, i32) {
    %c0_i32 = arith.constant 0 : i32
    return %arg0, %arg1 : i32, i32
  }
  func.func @transform_1(%arg0: i32, %arg1: i32) -> (i32, i32) {
    %c0_i32 = arith.constant 0 : i32
    %c0_i32_0 = arith.constant 0 : i32
    return %c0_i32, %arg1 : i32, i32
  }
  func.func @transform_2(%arg0: i32, %arg1: i32) -> (i32, i32) {
    %c0_i32 = arith.constant 0 : i32
    %c0_i32_0 = arith.constant 0 : i32
    return %c0_i32, %arg1 : i32, i32
  }
  func.func @transform_3(%arg0: i32, %arg1: i32) -> (i32, i32) {
    %c0_i32 = arith.constant 0 : i32
    return %arg0, %arg1 : i32, i32
  }
}

</mosaic_0001>

<llo_original>
// kernel: _conv_bn.2
$region0: #{_conv_bn.2}
  #allocation0 [shape = 'u32[]', space=smem, size = 0x4, offset = 0x4, fixed_abs, tag = 'smem constant byte address 0x4 - core index']
  #allocation1 [shape = 'u32[144,128]{1,0:T(1,128)}', space=vmem, size = 0x12000, scoped, tag = 'internal scratch']
  #allocation2 [shape = 'f32[512,128]{1,0:T(8,128)}', space=vmem, size = 0x40000, scoped, tag = 'scratch operand']
  %s0 = inlined_call_operand.vmem [shape: bf16[512,256], index: 0, kind: input, shape index: {}]
  %s1 = inlined_call_operand.vmem [shape: bf16[256,128], index: 1, kind: input, shape index: {}]
  %s2 = inlined_call_operand.vmem [shape: f32[512,128], index: 2, kind: output, shape index: {0}]
  %s3 = inlined_call_operand.vmem [shape: f32[8,128], index: 3, kind: output, shape index: {1}]
  %4 = xla_tuple %s2, %s3
  %s5 = sld [smem:[#allocation0]]
  $region34: #{_conv_bn.2} parent=0
    _
  %s7 = ssub.s32 1, %s5
  %s8 = scalar_select 0, %s7, %s5
  // Predicated region
  $region2: #{_conv_bn.2} parent=0 // pred_check
    _
  $region3: #{_conv_bn.2} parent=0 // pred_check_branch
    %10 = sbr.rel (0) target = $region5
  $region4: #{_conv_bn.2} parent=0 // pred_region
    _
  $region5: #{_conv_bn.2} parent=0 // pred_fallthru
    _
  // Predicated region
  $region6: #{_conv_bn.2} parent=0 // pred_check
    _
  $region7: #{_conv_bn.2} parent=0 // pred_check_branch
    %12 = sbr.rel (0) target = $region9
  $region8: #{_conv_bn.2} parent=0 // pred_region
    _
  $region9: #{_conv_bn.2} parent=0 // pred_fallthru
    _
  %p14 = scmp.eq.s32.totalorder 0, 0
  // Predicated region
  $region10: #{_conv_bn.2} parent=0 // pred_check
    %p15 = pneg %p14
  $region11: #{_conv_bn.2} parent=0 // pred_check_branch
    %17 = sbr.rel (%p15) target = $region13
  $region12: #{_conv_bn.2} parent=0 // pred_region
    %18 = vst [vmem:[#allocation2] sm:$0xff] 0.0
    %19 = vst [vmem:[#allocation2 + $0x8] sm:$0xff] 0.0
    %20 = vst [vmem:[#allocation2 + $0x10] sm:$0xff] 0.0
    %21 = vst [vmem:[#allocation2 + $0x18] sm:$0xff] 0.0
    %22 = vst [vmem:[#allocation2 + $0x20] sm:$0xff] 0.0
    %23 = vst [vmem:[#allocation2 + $0x28] sm:$0xff] 0.0
    %24 = vst [vmem:[#allocation2 + $0x30] sm:$0xff] 0.0
    %25 = vst [vmem:[#allocation2 + $0x38] sm:$0xff] 0.0
    %26 = vst [vmem:[#allocation2 + $0x40] sm:$0xff] 0.0
    %27 = vst [vmem:[#allocation2 + $0x48] sm:$0xff] 0.0
    %28 = vst [vmem:[#allocation2 + $0x50] sm:$0xff] 0.0
    %29 = vst [vmem:[#allocation2 + $0x58] sm:$0xff] 0.0
    %30 = vst [vmem:[#allocation2 + $0x60] sm:$0xff] 0.0
    %31 = vst [vmem:[#allocation2 + $0x68] sm:$0xff] 0.0
    %32 = vst [vmem:[#allocation2 + $0x70] sm:$0xff] 0.0
    %33 = vst [vmem:[#allocation2 + $0x78] sm:$0xff] 0.0
    %34 = vst [vmem:[#allocation2 + $0x80] sm:$0xff] 0.0
    %35 = vst [vmem:[#allocation2 + $0x88] sm:$0xff] 0.0
    %36 = vst [vmem:[#allocation2 + $0x90] sm:$0xff] 0.0
    %37 = vst [vmem:[#allocation2 + $0x98] sm:$0xff] 0.0
    %38 = vst [vmem:[#allocation2 + $0xa0] sm:$0xff] 0.0
    %39 = vst [vmem:[#allocation2 + $0xa8] sm:$0xff] 0.0
    %40 = vst [vmem:[#allocation2 + $0xb0] sm:$0xff] 0.0
    %41 = vst [vmem:[#allocation2 + $0xb8] sm:$0xff] 0.0
    %42 = vst [vmem:[#allocation2 + $0xc0] sm:$0xff] 0.0
    %43 = vst [vmem:[#allocation2 + $0xc8] sm:$0xff] 0.0
    %44 = vst [vmem:[#allocation2 + $0xd0] sm:$0xff] 0.0
    %45 = vst [vmem:[#allocation2 + $0xd8] sm:$0xff] 0.0
    %46 = vst [vmem:[#allocation2 + $0xe0] sm:$0xff] 0.0
    %47 = vst [vmem:[#allocation2 + $0xe8] sm:$0xff] 0.0
    %48 = vst [vmem:[#allocation2 + $0xf0] sm:$0xff] 0.0
    %49 = vst [vmem:[#allocation2 + $0xf8] sm:$0xff] 0.0
    %50 = vst [vmem:[#allocation2 + $0x100] sm:$0xff] 0.0
    %51 = vst [vmem:[#allocation2 + $0x108] sm:$0xff] 0.0
    %52 = vst [vmem:[#allocation2 + $0x110] sm:$0xff] 0.0
    %53 = vst [vmem:[#allocation2 + $0x118] sm:$0xff] 0.0
    %54 = vst [vmem:[#allocation2 + $0x120] sm:$0xff] 0.0
    %55 = vst [vmem:[#allocation2 + $0x128] sm:$0xff] 0.0
    %56 = vst [vmem:[#allocation2 + $0x130] sm:$0xff] 0.0
    %57 = vst [vmem:[#allocation2 + $0x138] sm:$0xff] 0.0
    %58 = vst [vmem:[#allocation2 + $0x140] sm:$0xff] 0.0
    %59 = vst [vmem:[#allocation2 + $0x148] sm:$0xff] 0.0
    %60 = vst [vmem:[#allocation2 + $0x150] sm:$0xff] 0.0
    %61 = vst [vmem:[#allocation2 + $0x158] sm:$0xff] 0.0
    %62 = vst [vmem:[#allocation2 + $0x160] sm:$0xff] 0.0
    %63 = vst [vmem:[#allocation2 + $0x168] sm:$0xff] 0.0
    %64 = vst [vmem:[#allocation2 + $0x170] sm:$0xff] 0.0
    %65 = vst [vmem:[#allocation2 + $0x178] sm:$0xff] 0.0
    %66 = vst [vmem:[#allocation2 + $0x180] sm:$0xff] 0.0
    %67 = vst [vmem:[#allocation2 + $0x188] sm:$0xff] 0.0
    %68 = vst [vmem:[#allocation2 + $0x190] sm:$0xff] 0.0
    %69 = vst [vmem:[#allocation2 + $0x198] sm:$0xff] 0.0
    %70 = vst [vmem:[#allocation2 + $0x1a0] sm:$0xff] 0.0
    %71 = vst [vmem:[#allocation2 + $0x1a8] sm:$0xff] 0.0
    %72 = vst [vmem:[#allocation2 + $0x1b0] sm:$0xff] 0.0
    %73 = vst [vmem:[#allocation2 + $0x1b8] sm:$0xff] 0.0
    %74 = vst [vmem:[#allocation2 + $0x1c0] sm:$0xff] 0.0
    %75 = vst [vmem:[#allocation2 + $0x1c8] sm:$0xff] 0.0
    %76 = vst [vmem:[#allocation2 + $0x1d0] sm:$0xff] 0.0
    %77 = vst [vmem:[#allocation2 + $0x1d8] sm:$0xff] 0.0
    %78 = vst [vmem:[#allocation2 + $0x1e0] sm:$0xff] 0.0
    %79 = vst [vmem:[#allocation2 + $0x1e8] sm:$0xff] 0.0
    %80 = vst [vmem:[#allocation2 + $0x1f0] sm:$0xff] 0.0
    %81 = vst [vmem:[#allocation2 + $0x1f8] sm:$0xff] 0.0
  $region13: #{_conv_bn.2} parent=0 // pred_fallthru
    _
  %v82 = vld [vmem:[#allocation2] sm:$0xff]
  %v83 = vld [vmem:[#allocation2 + $0x8] sm:$0xff]
  %v84 = vld [vmem:[#allocation2 + $0x10] sm:$0xff]
  %v85 = vld [vmem:[#allocation2 + $0x18] sm:$0xff]
  %v86 = vld [vmem:[#allocation2 + $0x20] sm:$0xff]
  %v87 = vld [vmem:[#allocation2 + $0x28] sm:$0xff]
  %v88 = vld [vmem:[#allocation2 + $0x30] sm:$0xff]
  %v89 = vld [vmem:[#allocation2 + $0x38] sm:$0xff]
  %v90 = vld [vmem:[#allocation2 + $0x40] sm:$0xff]
  %v91 = vld [vmem:[#allocation2 + $0x48] sm:$0xff]
  %v92 = vld [vmem:[#allocation2 + $0x50] sm:$0xff]
  %v93 = vld [vmem:[#allocation2 + $0x58] sm:$0xff]
  %v94 = vld [vmem:[#allocation2 + $0x60] sm:$0xff]
  %v95 = vld [vmem:[#allocation2 + $0x68] sm:$0xff]
  %v96 = vld [vmem:[#allocation2 + $0x70] sm:$0xff]
  %v97 = vld [vmem:[#allocation2 + $0x78] sm:$0xff]
  %v98 = vld [vmem:[#allocation2 + $0x80] sm:$0xff]
  %v99 = vld [vmem:[#allocation2 + $0x88] sm:$0xff]
  %v100 = vld [vmem:[#allocation2 + $0x90] sm:$0xff]
  %v101 = vld [vmem:[#allocation2 + $0x98] sm:$0xff]
  %v102 = vld [vmem:[#allocation2 + $0xa0] sm:$0xff]
  %v103 = vld [vmem:[#allocation2 + $0xa8] sm:$0xff]
  %v104 = vld [vmem:[#allocation2 + $0xb0] sm:$0xff]
  %v105 = vld [vmem:[#allocation2 + $0xb8] sm:$0xff]
  %v106 = vld [vmem:[#allocation2 + $0xc0] sm:$0xff]
  %v107 = vld [vmem:[#allocation2 + $0xc8] sm:$0xff]
  %v108 = vld [vmem:[#allocation2 + $0xd0] sm:$0xff]
  %v109 = vld [vmem:[#allocation2 + $0xd8] sm:$0xff]
  %v110 = vld [vmem:[#allocation2 + $0xe0] sm:$0xff]
  %v111 = vld [vmem:[#allocation2 + $0xe8] sm:$0xff]
  %v112 = vld [vmem:[#allocation2 + $0xf0] sm:$0xff]
  %v113 = vld [vmem:[#allocation2 + $0xf8] sm:$0xff]
  %v114 = vld [vmem:[#allocation2 + $0x100] sm:$0xff]
  %v115 = vld [vmem:[#allocation2 + $0x108] sm:$0xff]
  %v116 = vld [vmem:[#allocation2 + $0x110] sm:$0xff]
  %v117 = vld [vmem:[#allocation2 + $0x118] sm:$0xff]
  %v118 = vld [vmem:[#allocation2 + $0x120] sm:$0xff]
  %v119 = vld [vmem:[#allocation2 + $0x128] sm:$0xff]
  %v120 = vld [vmem:[#allocation2 + $0x130] sm:$0xff]
  %v121 = vld [vmem:[#allocation2 + $0x138] sm:$0xff]
  %v122 = vld [vmem:[#allocation2 + $0x140] sm:$0xff]
  %v123 = vld [vmem:[#allocation2 + $0x148] sm:$0xff]
  %v124 = vld [vmem:[#allocation2 + $0x150] sm:$0xff]
  %v125 = vld [vmem:[#allocation2 + $0x158] sm:$0xff]
  %v126 = vld [vmem:[#allocation2 + $0x160] sm:$0xff]
  %v127 = vld [vmem:[#allocation2 + $0x168] sm:$0xff]
  %v128 = vld [vmem:[#allocation2 + $0x170] sm:$0xff]
  %v129 = vld [vmem:[#allocation2 + $0x178] sm:$0xff]
  %v130 = vld [vmem:[#allocation2 + $0x180] sm:$0xff]
  %v131 = vld [vmem:[#allocation2 + $0x188] sm:$0xff]
  %v132 = vld [vmem:[#allocation2 + $0x190] sm:$0xff]
  %v133 = vld [vmem:[#allocation2 + $0x198] sm:$0xff]
  %v134 = vld [vmem:[#allocation2 + $0x1a0] sm:$0xff]
  %v135 = vld [vmem:[#allocation2 + $0x1a8] sm:$0xff]
  %v136 = vld [vmem:[#allocation2 + $0x1b0] sm:$0xff]
  %v137 = vld [vmem:[#allocation2 + $0x1b8] sm:$0xff]
  %v138 = vld [vmem:[#allocation2 + $0x1c0] sm:$0xff]
  %v139 = vld [vmem:[#allocation2 + $0x1c8] sm:$0xff]
  %v140 = vld [vmem:[#allocation2 + $0x1d0] sm:$0xff]
  %v141 = vld [vmem:[#allocation2 + $0x1d8] sm:$0xff]
  %v142 = vld [vmem:[#allocation2 + $0x1e0] sm:$0xff]
  %v143 = vld [vmem:[#allocation2 + $0x1e8] sm:$0xff]
  %v144 = vld [vmem:[#allocation2 + $0x1f0] sm:$0xff]
  %v145 = vld [vmem:[#allocation2 + $0x1f8] sm:$0xff]
  %v146 = vld [vmem:[%s0] sm:$0xff]
  %v147 = vld [vmem:[%s0 + $0x8] sm:$0xff]
  %v148 = vld [vmem:[%s0 + $0x10] sm:$0xff]
  %v149 = vld [vmem:[%s0 + $0x18] sm:$0xff]
  %v150 = vld [vmem:[%s0 + $0x20] sm:$0xff]
  %v151 = vld [vmem:[%s0 + $0x28] sm:$0xff]
  %v152 = vld [vmem:[%s0 + $0x30] sm:$0xff]
  %v153 = vld [vmem:[%s0 + $0x38] sm:$0xff]
  %v154 = vld [vmem:[%s0 + $0x40] sm:$0xff]
  %v155 = vld [vmem:[%s0 + $0x48] sm:$0xff]
  %v156 = vld [vmem:[%s0 + $0x50] sm:$0xff]
  %v157 = vld [vmem:[%s0 + $0x58] sm:$0xff]
  %v158 = vld [vmem:[%s0 + $0x60] sm:$0xff]
  %v159 = vld [vmem:[%s0 + $0x68] sm:$0xff]
  %v160 = vld [vmem:[%s0 + $0x70] sm:$0xff]
  %v161 = vld [vmem:[%s0 + $0x78] sm:$0xff]
  %v162 = vld [vmem:[%s0 + $0x80] sm:$0xff]
  %v163 = vld [vmem:[%s0 + $0x88] sm:$0xff]
  %v164 = vld [vmem:[%s0 + $0x90] sm:$0xff]
  %v165 = vld [vmem:[%s0 + $0x98] sm:$0xff]
  %v166 = vld [vmem:[%s0 + $0xa0] sm:$0xff]
  %v167 = vld [vmem:[%s0 + $0xa8] sm:$0xff]
  %v168 = vld [vmem:[%s0 + $0xb0] sm:$0xff]
  %v169 = vld [vmem:[%s0 + $0xb8] sm:$0xff]
  %v170 = vld [vmem:[%s0 + $0xc0] sm:$0xff]
  %v171 = vld [vmem:[%s0 + $0xc8] sm:$0xff]
  %v172 = vld [vmem:[%s0 + $0xd0] sm:$0xff]
  %v173 = vld [vmem:[%s0 + $0xd8] sm:$0xff]
  %v174 = vld [vmem:[%s0 + $0xe0] sm:$0xff]
  %v175 = vld [vmem:[%s0 + $0xe8] sm:$0xff]
  %v176 = vld [vmem:[%s0 + $0xf0] sm:$0xff]
  %v177 = vld [vmem:[%s0 + $0xf8] sm:$0xff]
  %v178 = vld [vmem:[%s0 + $0x100] sm:$0xff]
  %v179 = vld [vmem:[%s0 + $0x108] sm:$0xff]
  %v180 = vld [vmem:[%s0 + $0x110] sm:$0xff]
  %v181 = vld [vmem:[%s0 + $0x118] sm:$0xff]
  %v182 = vld [vmem:[%s0 + $0x120] sm:$0xff]
  %v183 = vld [vmem:[%s0 + $0x128] sm:$0xff]
  %v184 = vld [vmem:[%s0 + $0x130] sm:$0xff]
  %v185 = vld [vmem:[%s0 + $0x138] sm:$0xff]
  %v186 = vld [vmem:[%s0 + $0x140] sm:$0xff]
  %v187 = vld [vmem:[%s0 + $0x148] sm:$0xff]
  %v188 = vld [vmem:[%s0 + $0x150] sm:$0xff]
  %v189 = vld [vmem:[%s0 + $0x158] sm:$0xff]
  %v190 = vld [vmem:[%s0 + $0x160] sm:$0xff]
  %v191 = vld [vmem:[%s0 + $0x168] sm:$0xff]
  %v192 = vld [vmem:[%s0 + $0x170] sm:$0xff]
  %v193 = vld [vmem:[%s0 + $0x178] sm:$0xff]
  %v194 = vld [vmem:[%s0 + $0x180] sm:$0xff]
  %v195 = vld [vmem:[%s0 + $0x188] sm:$0xff]
  %v196 = vld [vmem:[%s0 + $0x190] sm:$0xff]
  %v197 = vld [vmem:[%s0 + $0x198] sm:$0xff]
  %v198 = vld [vmem:[%s0 + $0x1a0] sm:$0xff]
  %v199 = vld [vmem:[%s0 + $0x1a8] sm:$0xff]
  %v200 = vld [vmem:[%s0 + $0x1b0] sm:$0xff]
  %v201 = vld [vmem:[%s0 + $0x1b8] sm:$0xff]
  %v202 = vld [vmem:[%s0 + $0x1c0] sm:$0xff]
  %v203 = vld [vmem:[%s0 + $0x1c8] sm:$0xff]
  %v204 = vld [vmem:[%s0 + $0x1d0] sm:$0xff]
  %v205 = vld [vmem:[%s0 + $0x1d8] sm:$0xff]
  %v206 = vld [vmem:[%s0 + $0x1e0] sm:$0xff]
  %v207 = vld [vmem:[%s0 + $0x1e8] sm:$0xff]
  %v208 = vld [vmem:[%s0 + $0x1f0] sm:$0xff]
  %v209 = vld [vmem:[%s0 + $0x1f8] sm:$0xff]
  %v210 = vld [vmem:[%s1] sm:$0xf]
  %v211 = vld [vmem:[%s1 + $0x4] sm:$0xf]
  %v212 = vld [vmem:[%s1 + $0x8] sm:$0xf]
  %v213 = vld [vmem:[%s1 + $0xc] sm:$0xf]
  %v214 = vld [vmem:[%s1 + $0x10] sm:$0xf]
  %v215 = vld [vmem:[%s1 + $0x14] sm:$0xf]
  %v216 = vld [vmem:[%s1 + $0x18] sm:$0xf]
  %v217 = vld [vmem:[%s1 + $0x1c] sm:$0xf]
  %v218 = vld [vmem:[%s1 + $0x20] sm:$0xf]
  %v219 = vld [vmem:[%s1 + $0x24] sm:$0xf]
  %v220 = vld [vmem:[%s1 + $0x28] sm:$0xf]
  %v221 = vld [vmem:[%s1 + $0x2c] sm:$0xf]
  %v222 = vld [vmem:[%s1 + $0x30] sm:$0xf]
  %v223 = vld [vmem:[%s1 + $0x34] sm:$0xf]
  %v224 = vld [vmem:[%s1 + $0x38] sm:$0xf]
  %v225 = vld [vmem:[%s1 + $0x3c] sm:$0xf]
  %v226 = vld [vmem:[%s1 + $0x40] sm:$0xf]
  %v227 = vld [vmem:[%s1 + $0x44] sm:$0xf]
  %v228 = vld [vmem:[%s1 + $0x48] sm:$0xf]
  %v229 = vld [vmem:[%s1 + $0x4c] sm:$0xf]
  %v230 = vld [vmem:[%s1 + $0x50] sm:$0xf]
  %v231 = vld [vmem:[%s1 + $0x54] sm:$0xf]
  %v232 = vld [vmem:[%s1 + $0x58] sm:$0xf]
  %v233 = vld [vmem:[%s1 + $0x5c] sm:$0xf]
  %v234 = vld [vmem:[%s1 + $0x60] sm:$0xf]
  %v235 = vld [vmem:[%s1 + $0x64] sm:$0xf]
  %v236 = vld [vmem:[%s1 + $0x68] sm:$0xf]
  %v237 = vld [vmem:[%s1 + $0x6c] sm:$0xf]
  %v238 = vld [vmem:[%s1 + $0x70] sm:$0xf]
  %v239 = vld [vmem:[%s1 + $0x74] sm:$0xf]
  %v240 = vld [vmem:[%s1 + $0x78] sm:$0xf]
  %v241 = vld [vmem:[%s1 + $0x7c] sm:$0xf]
  %v306 = vunpack.c.l.b16 %v146
  %v307 = vunpack.c.h.b16 %v146
  %v308 = vunpack.c.l.b16 %v147
  %v309 = vunpack.c.h.b16 %v147
  %v310 = vunpack.c.l.b16 %v148
  %v311 = vunpack.c.h.b16 %v148
  %v312 = vunpack.c.l.b16 %v149
  %v313 = vunpack.c.h.b16 %v149
  %v314 = vunpack.c.l.b16 %v150
  %v315 = vunpack.c.h.b16 %v150
  %v316 = vunpack.c.l.b16 %v151
  %v317 = vunpack.c.h.b16 %v151
  %v318 = vunpack.c.l.b16 %v152
  %v319 = vunpack.c.h.b16 %v152
  %v320 = vunpack.c.l.b16 %v153
  %v321 = vunpack.c.h.b16 %v153
  %v322 = vunpack.c.l.b16 %v154
  %v323 = vunpack.c.h.b16 %v154
  %v324 = vunpack.c.l.b16 %v155
  %v325 = vunpack.c.h.b16 %v155
  %v326 = vunpack.c.l.b16 %v156
  %v327 = vunpack.c.h.b16 %v156
  %v328 = vunpack.c.l.b16 %v157
  %v329 = vunpack.c.h.b16 %v157
  %v330 = vunpack.c.l.b16 %v158
  %v331 = vunpack.c.h.b16 %v158
  %v332 = vunpack.c.l.b16 %v159
  %v333 = vunpack.c.h.b16 %v159
  %v334 = vunpack.c.l.b16 %v160
  %v335 = vunpack.c.h.b16 %v160
  %v336 = vunpack.c.l.b16 %v161
  %v337 = vunpack.c.h.b16 %v161
  %v338 = vunpack.c.l.b16 %v162
  %v339 = vunpack.c.h.b16 %v162
  %v340 = vunpack.c.l.b16 %v163
  %v341 = vunpack.c.h.b16 %v163
  %v342 = vunpack.c.l.b16 %v164
  %v343 = vunpack.c.h.b16 %v164
  %v344 = vunpack.c.l.b16 %v165
  %v345 = vunpack.c.h.b16 %v165
  %v346 = vunpack.c.l.b16 %v166
  %v347 = vunpack.c.h.b16 %v166
  %v348 = vunpack.c.l.b16 %v167
  %v349 = vunpack.c.h.b16 %v167
  %v350 = vunpack.c.l.b16 %v168
  %v351 = vunpack.c.h.b16 %v168
  %v352 = vunpack.c.l.b16 %v169
  %v353 = vunpack.c.h.b16 %v169
  %v354 = vunpack.c.l.b16 %v170
  %v355 = vunpack.c.h.b16 %v170
  %v356 = vunpack.c.l.b16 %v171
  %v357 = vunpack.c.h.b16 %v171
  %v358 = vunpack.c.l.b16 %v172
  %v359 = vunpack.c.h.b16 %v172
  %v360 = vunpack.c.l.b16 %v173
  %v361 = vunpack.c.h.b16 %v173
  %v362 = vunpack.c.l.b16 %v174
  %v363 = vunpack.c.h.b16 %v174
  %v364 = vunpack.c.l.b16 %v175
  %v365 = vunpack.c.h.b16 %v175
  %v366 = vunpack.c.l.b16 %v176
  %v367 = vunpack.c.h.b16 %v176
  %v368 = vunpack.c.l.b16 %v177
  %v369 = vunpack.c.h.b16 %v177
  %v370 = vunpack.c.l.b16 %v178
  %v371 = vunpack.c.h.b16 %v178
  %v372 = vunpack.c.l.b16 %v179
  %v373 = vunpack.c.h.b16 %v179
  %v374 = vunpack.c.l.b16 %v180
  %v375 = vunpack.c.h.b16 %v180
  %v376 = vunpack.c.l.b16 %v181
  %v377 = vunpack.c.h.b16 %v181
  %v378 = vunpack.c.l.b16 %v182
  %v379 = vunpack.c.h.b16 %v182
  %v380 = vunpack.c.l.b16 %v183
  %v381 = vunpack.c.h.b16 %v183
  %v382 = vunpack.c.l.b16 %v184
  %v383 = vunpack.c.h.b16 %v184
  %v384 = vunpack.c.l.b16 %v185
  %v385 = vunpack.c.h.b16 %v185
  %v386 = vunpack.c.l.b16 %v186
  %v387 = vunpack.c.h.b16 %v186
  %v388 = vunpack.c.l.b16 %v187
  %v389 = vunpack.c.h.b16 %v187
  %v390 = vunpack.c.l.b16 %v188
  %v391 = vunpack.c.h.b16 %v188
  %v392 = vunpack.c.l.b16 %v189
  %v393 = vunpack.c.h.b16 %v189
  %v394 = vunpack.c.l.b16 %v190
  %v395 = vunpack.c.h.b16 %v190
  %v396 = vunpack.c.l.b16 %v191
  %v397 = vunpack.c.h.b16 %v191
  %v398 = vunpack.c.l.b16 %v192
  %v399 = vunpack.c.h.b16 %v192
  %v400 = vunpack.c.l.b16 %v193
  %v401 = vunpack.c.h.b16 %v193
  %v402 = vunpack.c.l.b16 %v194
  %v403 = vunpack.c.h.b16 %v194
  %v404 = vunpack.c.l.b16 %v195
  %v405 = vunpack.c.h.b16 %v195
  %v406 = vunpack.c.l.b16 %v196
  %v407 = vunpack.c.h.b16 %v196
  %v408 = vunpack.c.l.b16 %v197
  %v409 = vunpack.c.h.b16 %v197
  %v410 = vunpack.c.l.b16 %v198
  %v411 = vunpack.c.h.b16 %v198
  %v412 = vunpack.c.l.b16 %v199
  %v413 = vunpack.c.h.b16 %v199
  %v414 = vunpack.c.l.b16 %v200
  %v415 = vunpack.c.h.b16 %v200
  %v416 = vunpack.c.l.b16 %v201
  %v417 = vunpack.c.h.b16 %v201
  %v418 = vunpack.c.l.b16 %v202
  %v419 = vunpack.c.h.b16 %v202
  %v420 = vunpack.c.l.b16 %v203
  %v421 = vunpack.c.h.b16 %v203
  %v422 = vunpack.c.l.b16 %v204
  %v423 = vunpack.c.h.b16 %v204
  %v424 = vunpack.c.l.b16 %v205
  %v425 = vunpack.c.h.b16 %v205
  %v426 = vunpack.c.l.b16 %v206
  %v427 = vunpack.c.h.b16 %v206
  %v428 = vunpack.c.l.b16 %v207
  %v429 = vunpack.c.h.b16 %v207
  %v430 = vunpack.c.l.b16 %v208
  %v431 = vunpack.c.h.b16 %v208
  %v432 = vunpack.c.l.b16 %v209
  %v433 = vunpack.c.h.b16 %v209
  %v434 = vpack.c.b16 %v308, %v306
  %v435 = vpack.c.b16 %v309, %v307
  %v436 = vpack.c.b16 %v312, %v310
  %v437 = vpack.c.b16 %v313, %v311
  %v438 = vpack.c.b16 %v316, %v314
  %v439 = vpack.c.b16 %v317, %v315
  %v440 = vpack.c.b16 %v320, %v318
  %v441 = vpack.c.b16 %v321, %v319
  %v442 = vpack.c.b16 %v324, %v322
  %v443 = vpack.c.b16 %v325, %v323
  %v444 = vpack.c.b16 %v328, %v326
  %v445 = vpack.c.b16 %v329, %v327
  %v446 = vpack.c.b16 %v332, %v330
  %v447 = vpack.c.b16 %v333, %v331
  %v448 = vpack.c.b16 %v336, %v334
  %v449 = vpack.c.b16 %v337, %v335
  %v450 = vpack.c.b16 %v340, %v338
  %v451 = vpack.c.b16 %v341, %v339
  %v452 = vpack.c.b16 %v344, %v342
  %v453 = vpack.c.b16 %v345, %v343
  %v454 = vpack.c.b16 %v348, %v346
  %v455 = vpack.c.b16 %v349, %v347
  %v456 = vpack.c.b16 %v352, %v350
  %v457 = vpack.c.b16 %v353, %v351
  %v458 = vpack.c.b16 %v356, %v354
  %v459 = vpack.c.b16 %v357, %v355
  %v460 = vpack.c.b16 %v360, %v358
  %v461 = vpack.c.b16 %v361, %v359
  %v462 = vpack.c.b16 %v364, %v362
  %v463 = vpack.c.b16 %v365, %v363
  %v464 = vpack.c.b16 %v368, %v366
  %v465 = vpack.c.b16 %v369, %v367
  %v466 = vpack.c.b16 %v372, %v370
  %v467 = vpack.c.b16 %v373, %v371
  %v468 = vpack.c.b16 %v376, %v374
  %v469 = vpack.c.b16 %v377, %v375
  %v470 = vpack.c.b16 %v380, %v378
  %v471 = vpack.c.b16 %v381, %v379
  %v472 = vpack.c.b16 %v384, %v382
  %v473 = vpack.c.b16 %v385, %v383
  %v474 = vpack.c.b16 %v388, %v386
  %v475 = vpack.c.b16 %v389, %v387
  %v476 = vpack.c.b16 %v392, %v390
  %v477 = vpack.c.b16 %v393, %v391
  %v478 = vpack.c.b16 %v396, %v394
  %v479 = vpack.c.b16 %v397, %v395
  %v480 = vpack.c.b16 %v400, %v398
  %v481 = vpack.c.b16 %v401, %v399
  %v482 = vpack.c.b16 %v404, %v402
  %v483 = vpack.c.b16 %v405, %v403
  %v484 = vpack.c.b16 %v408, %v406
  %v485 = vpack.c.b16 %v409, %v407
  %v486 = vpack.c.b16 %v412, %v410
  %v487 = vpack.c.b16 %v413, %v411
  %v488 = vpack.c.b16 %v416, %v414
  %v489 = vpack.c.b16 %v417, %v415
  %v490 = vpack.c.b16 %v420, %v418
  %v491 = vpack.c.b16 %v421, %v419
  %v492 = vpack.c.b16 %v424, %v422
  %v493 = vpack.c.b16 %v425, %v423
  %v494 = vpack.c.b16 %v428, %v426
  %v495 = vpack.c.b16 %v429, %v427
  %v496 = vpack.c.b16 %v432, %v430
  %v497 = vpack.c.b16 %v433, %v431
  %v594 = vunpack.c.l.b16 %v210
  %v595 = vunpack.c.l.b16 %v211
  %v596 = vunpack.c.l.b16 %v212
  %v597 = vunpack.c.l.b16 %v213
  %v598 = vunpack.c.l.b16 %v214
  %v599 = vunpack.c.l.b16 %v215
  %v600 = vunpack.c.l.b16 %v216
  %v601 = vunpack.c.l.b16 %v217
  %v602 = vunpack.c.l.b16 %v218
  %v603 = vunpack.c.l.b16 %v219
  %v604 = vunpack.c.l.b16 %v220
  %v605 = vunpack.c.l.b16 %v221
  %v606 = vunpack.c.l.b16 %v222
  %v607 = vunpack.c.l.b16 %v223
  %v608 = vunpack.c.l.b16 %v224
  %v609 = vunpack.c.l.b16 %v225
  %v610 = vunpack.c.l.b16 %v226
  %v611 = vunpack.c.l.b16 %v227
  %v612 = vunpack.c.l.b16 %v228
  %v613 = vunpack.c.l.b16 %v229
  %v614 = vunpack.c.l.b16 %v230
  %v615 = vunpack.c.l.b16 %v231
  %v616 = vunpack.c.l.b16 %v232
  %v617 = vunpack.c.l.b16 %v233
  %v618 = vunpack.c.l.b16 %v234
  %v619 = vunpack.c.l.b16 %v235
  %v620 = vunpack.c.l.b16 %v236
  %v621 = vunpack.c.l.b16 %v237
  %v622 = vunpack.c.l.b16 %v238
  %v623 = vunpack.c.l.b16 %v239
  %v624 = vunpack.c.l.b16 %v240
  %v625 = vunpack.c.l.b16 %v241
  %v626 = vpack.c.b16 %v595, %v594
  %v627 = vpack.c.b16 %v597, %v596
  %v628 = vpack.c.b16 %v599, %v598
  %v629 = vpack.c.b16 %v601, %v600
  %v630 = vpack.c.b16 %v603, %v602
  %v631 = vpack.c.b16 %v605, %v604
  %v632 = vpack.c.b16 %v607, %v606
  %v633 = vpack.c.b16 %v609, %v608
  %v634 = vpack.c.b16 %v611, %v610
  %v635 = vpack.c.b16 %v613, %v612
  %v636 = vpack.c.b16 %v615, %v614
  %v637 = vpack.c.b16 %v617, %v616
  %v638 = vpack.c.b16 %v619, %v618
  %v639 = vpack.c.b16 %v621, %v620
  %v640 = vpack.c.b16 %v623, %v622
  %v641 = vpack.c.b16 %v625, %v624
  %658 = vmatprep.subr.bf16.mxu0 0
  %659 = vmatpush1.bf16.msra.mxu0 %v633
  %660 = vmatprep.subr.bf16.mxu0 0
  %661 = vmatpush1.bf16.msra.mxu0 %v632
  %662 = vmatprep.subr.bf16.mxu0 0
  %663 = vmatpush1.bf16.msra.mxu0 %v631
  %664 = vmatprep.subr.bf16.mxu0 0
  %665 = vmatpush1.bf16.msra.mxu0 %v630
  %666 = vmatprep.subr.bf16.mxu0 0
  %667 = vmatpush1.bf16.msra.mxu0 %v629
  %668 = vmatprep.subr.bf16.mxu0 0
  %669 = vmatpush1.bf16.msra.mxu0 %v628
  %670 = vmatprep.subr.bf16.mxu0 0
  %671 = vmatpush1.bf16.msra.mxu0 %v627
  %672 = vmatprep.subr.bf16.mxu0 0
  %673 = vmatpush1.bf16.msra.mxu0 %v626
  %674 = vmatprep.subr.bf16.mxu0 0
  %675 = vmatpush2.bf16.msra.mxu0 %v641
  %676 = vmatprep.subr.bf16.mxu0 0
  %677 = vmatpush2.bf16.msra.mxu0 %v640
  %678 = vmatprep.subr.bf16.mxu0 0
  %679 = vmatpush2.bf16.msra.mxu0 %v639
  %680 = vmatprep.subr.bf16.mxu0 0
  %681 = vmatpush2.bf16.msra.mxu0 %v638
  %682 = vmatprep.subr.bf16.mxu0 0
  %683 = vmatpush2.bf16.msra.mxu0 %v637
  %684 = vmatprep.subr.bf16.mxu0 0
  %685 = vmatpush2.bf16.msra.mxu0 %v636
  %686 = vmatprep.subr.bf16.mxu0 0
  %687 = vmatpush2.bf16.msra.mxu0 %v635
  %688 = vmatprep.subr.bf16.mxu0 0
  %689 = vmatpush2.bf16.msra.mxu0 %v634
  %690 = vmatprep.mubr.bf16.mxu0 %v435
  %691 = vmatmul.mubr.bf16.gmra.mxu0 %v434
  %v692 = vpop.f32.mrf.mxu0
  %v693 = vadd.f32 0.0, %v692
  %v694 = vpop.f32.mrf.mxu0
  %v695 = vpop.f32.mrf.mxu0
  %v696 = vadd.f32 0.0, %v695
  %v697 = vpop.f32.mrf.mxu0
  %698 = vmatprep.mubr.bf16.mxu0 %v437
  %699 = vmatmul.mubr.bf16.gmra.mxu0 %v436
  %v700 = vpop.f32.mrf.mxu0
  %v701 = vadd.f32 0.0, %v700
  %v702 = vpop.f32.mrf.mxu0
  %v703 = vpop.f32.mrf.mxu0
  %v704 = vadd.f32 0.0, %v703
  %v705 = vpop.f32.mrf.mxu0
  %706 = vmatprep.mubr.bf16.mxu0 %v439
  %707 = vmatmul.mubr.bf16.gmra.mxu0 %v438
  %v708 = vpop.f32.mrf.mxu0
  %v709 = vadd.f32 0.0, %v708
  %v710 = vpop.f32.mrf.mxu0
  %v711 = vpop.f32.mrf.mxu0
  %v712 = vadd.f32 0.0, %v711
  %v713 = vpop.f32.mrf.mxu0
  %714 = vmatprep.mubr.bf16.mxu0 %v441
  %715 = vmatmul.mubr.bf16.gmra.mxu0 %v440
  %v716 = vpop.f32.mrf.mxu0
  %v717 = vadd.f32 0.0, %v716
  %v718 = vpop.f32.mrf.mxu0
  %v719 = vpop.f32.mrf.mxu0
  %v720 = vadd.f32 0.0, %v719
  %v721 = vpop.f32.mrf.mxu0
  %722 = vmatprep.mubr.bf16.mxu0 %v443
  %723 = vmatmul.mubr.bf16.gmra.mxu0 %v442
  %v724 = vpop.f32.mrf.mxu0
  %v725 = vadd.f32 0.0, %v724
  %v726 = vpop.f32.mrf.mxu0
  %v727 = vpop.f32.mrf.mxu0
  %v728 = vadd.f32 0.0, %v727
  %v729 = vpop.f32.mrf.mxu0
  %730 = vmatprep.mubr.bf16.mxu0 %v445
  %731 = vmatmul.mubr.bf16.gmra.mxu0 %v444
  %v732 = vpop.f32.mrf.mxu0
  %v733 = vadd.f32 0.0, %v732
  %v734 = vpop.f32.mrf.mxu0
  %v735 = vpop.f32.mrf.mxu0
  %v736 = vadd.f32 0.0, %v735
  %v737 = vpop.f32.mrf.mxu0
  %738 = vmatprep.mubr.bf16.mxu0 %v447
  %739 = vmatmul.mubr.bf16.gmra.mxu0 %v446
  %v740 = vpop.f32.mrf.mxu0
  %v741 = vadd.f32 0.0, %v740
  %v742 = vpop.f32.mrf.mxu0
  %v743 = vpop.f32.mrf.mxu0
  %v744 = vadd.f32 0.0, %v743
  %v745 = vpop.f32.mrf.mxu0
  %746 = vmatprep.mubr.bf16.mxu0 %v449
  %747 = vmatmul.mubr.bf16.gmra.mxu0 %v448
  %v748 = vpop.f32.mrf.mxu0
  %v749 = vadd.f32 0.0, %v748
  %v750 = vpop.f32.mrf.mxu0
  %v751 = vpop.f32.mrf.mxu0
  %v752 = vadd.f32 0.0, %v751
  %v753 = vpop.f32.mrf.mxu0
  %754 = vmatprep.mubr.bf16.mxu0 %v451
  %755 = vmatmul.mubr.bf16.gmra.mxu0 %v450
  %v756 = vpop.f32.mrf.mxu0
  %v757 = vadd.f32 0.0, %v756
  %v758 = vpop.f32.mrf.mxu0
  %v759 = vpop.f32.mrf.mxu0
  %v760 = vadd.f32 0.0, %v759
  %v761 = vpop.f32.mrf.mxu0
  %762 = vmatprep.mubr.bf16.mxu0 %v453
  %763 = vmatmul.mubr.bf16.gmra.mxu0 %v452
  %v764 = vpop.f32.mrf.mxu0
  %v765 = vadd.f32 0.0, %v764
  %v766 = vpop.f32.mrf.mxu0
  %v767 = vpop.f32.mrf.mxu0
  %v768 = vadd.f32 0.0, %v767
  %v769 = vpop.f32.mrf.mxu0
  %770 = vmatprep.mubr.bf16.mxu0 %v455
  %771 = vmatmul.mubr.bf16.gmra.mxu0 %v454
  %v772 = vpop.f32.mrf.mxu0
  %v773 = vadd.f32 0.0, %v772
  %v774 = vpop.f32.mrf.mxu0
  %v775 = vpop.f32.mrf.mxu0
  %v776 = vadd.f32 0.0, %v775
  %v777 = vpop.f32.mrf.mxu0
  %778 = vmatprep.mubr.bf16.mxu0 %v457
  %779 = vmatmul.mubr.bf16.gmra.mxu0 %v456
  %v780 = vpop.f32.mrf.mxu0
  %v781 = vadd.f32 0.0, %v780
  %v782 = vpop.f32.mrf.mxu0
  %v783 = vpop.f32.mrf.mxu0
  %v784 = vadd.f32 0.0, %v783
  %v785 = vpop.f32.mrf.mxu0
  %786 = vmatprep.mubr.bf16.mxu0 %v459
  %787 = vmatmul.mubr.bf16.gmra.mxu0 %v458
  %v788 = vpop.f32.mrf.mxu0
  %v789 = vadd.f32 0.0, %v788
  %v790 = vpop.f32.mrf.mxu0
  %v791 = vpop.f32.mrf.mxu0
  %v792 = vadd.f32 0.0, %v791
  %v793 = vpop.f32.mrf.mxu0
  %794 = vmatprep.mubr.bf16.mxu0 %v461
  %795 = vmatmul.mubr.bf16.gmra.mxu0 %v460
  %v796 = vpop.f32.mrf.mxu0
  %v797 = vadd.f32 0.0, %v796
  %v798 = vpop.f32.mrf.mxu0
  %v799 = vpop.f32.mrf.mxu0
  %v800 = vadd.f32 0.0, %v799
  %v801 = vpop.f32.mrf.mxu0
  %802 = vmatprep.mubr.bf16.mxu0 %v463
  %803 = vmatmul.mubr.bf16.gmra.mxu0 %v462
  %v804 = vpop.f32.mrf.mxu0
  %v805 = vadd.f32 0.0, %v804
  %v806 = vpop.f32.mrf.mxu0
  %v807 = vpop.f32.mrf.mxu0
  %v808 = vadd.f32 0.0, %v807
  %v809 = vpop.f32.mrf.mxu0
  %810 = vmatprep.mubr.bf16.mxu0 %v465
  %811 = vmatmul.mubr.bf16.gmra.mxu0 %v464
  %v812 = vpop.f32.mrf.mxu0
  %v813 = vadd.f32 0.0, %v812
  %v814 = vpop.f32.mrf.mxu0
  %v815 = vpop.f32.mrf.mxu0
  %v816 = vadd.f32 0.0, %v815
  %v817 = vpop.f32.mrf.mxu0
  %818 = vmatprep.mubr.bf16.mxu0 %v467
  %819 = vmatmul.mubr.bf16.gmra.mxu0 %v466
  %v820 = vpop.f32.mrf.mxu0
  %v821 = vadd.f32 0.0, %v820
  %v822 = vpop.f32.mrf.mxu0
  %v823 = vpop.f32.mrf.mxu0
  %v824 = vadd.f32 0.0, %v823
  %v825 = vpop.f32.mrf.mxu0
  %826 = vmatprep.mubr.bf16.mxu0 %v469
  %827 = vmatmul.mubr.bf16.gmra.mxu0 %v468
  %v828 = vpop.f32.mrf.mxu0
  %v829 = vadd.f32 0.0, %v828
  %v830 = vpop.f32.mrf.mxu0
  %v831 = vpop.f32.mrf.mxu0
  %v832 = vadd.f32 0.0, %v831
  %v833 = vpop.f32.mrf.mxu0
  %834 = vmatprep.mubr.bf16.mxu0 %v471
  %835 = vmatmul.mubr.bf16.gmra.mxu0 %v470
  %v836 = vpop.f32.mrf.mxu0
  %v837 = vadd.f32 0.0, %v836
  %v838 = vpop.f32.mrf.mxu0
  %v839 = vpop.f32.mrf.mxu0
  %v840 = vadd.f32 0.0, %v839
  %v841 = vpop.f32.mrf.mxu0
  %842 = vmatprep.mubr.bf16.mxu0 %v473
  %843 = vmatmul.mubr.bf16.gmra.mxu0 %v472
  %v844 = vpop.f32.mrf.mxu0
  %v845 = vadd.f32 0.0, %v844
  %v846 = vpop.f32.mrf.mxu0
  %v847 = vpop.f32.mrf.mxu0
  %v848 = vadd.f32 0.0, %v847
  %v849 = vpop.f32.mrf.mxu0
  %850 = vmatprep.mubr.bf16.mxu0 %v475
  %851 = vmatmul.mubr.bf16.gmra.mxu0 %v474
  %v852 = vpop.f32.mrf.mxu0
  %v853 = vadd.f32 0.0, %v852
  %v854 = vpop.f32.mrf.mxu0
  %v855 = vpop.f32.mrf.mxu0
  %v856 = vadd.f32 0.0, %v855
  %v857 = vpop.f32.mrf.mxu0
  %858 = vmatprep.mubr.bf16.mxu0 %v477
  %859 = vmatmul.mubr.bf16.gmra.mxu0 %v476
  %v860 = vpop.f32.mrf.mxu0
  %v861 = vadd.f32 0.0, %v860
  %v862 = vpop.f32.mrf.mxu0
  %v863 = vpop.f32.mrf.mxu0
  %v864 = vadd.f32 0.0, %v863
  %v865 = vpop.f32.mrf.mxu0
  %866 = vmatprep.mubr.bf16.mxu0 %v479
  %867 = vmatmul.mubr.bf16.gmra.mxu0 %v478
  %v868 = vpop.f32.mrf.mxu0
  %v869 = vadd.f32 0.0, %v868
  %v870 = vpop.f32.mrf.mxu0
  %v871 = vpop.f32.mrf.mxu0
  %v872 = vadd.f32 0.0, %v871
  %v873 = vpop.f32.mrf.mxu0
  %874 = vmatprep.mubr.bf16.mxu0 %v481
  %875 = vmatmul.mubr.bf16.gmra.mxu0 %v480
  %v876 = vpop.f32.mrf.mxu0
  %v877 = vadd.f32 0.0, %v876
  %v878 = vpop.f32.mrf.mxu0
  %v879 = vpop.f32.mrf.mxu0
  %v880 = vadd.f32 0.0, %v879
  %v881 = vpop.f32.mrf.mxu0
  %882 = vmatprep.mubr.bf16.mxu0 %v483
  %883 = vmatmul.mubr.bf16.gmra.mxu0 %v482
  %v884 = vpop.f32.mrf.mxu0
  %v885 = vadd.f32 0.0, %v884
  %v886 = vpop.f32.mrf.mxu0
  %v887 = vpop.f32.mrf.mxu0
  %v888 = vadd.f32 0.0, %v887
  %v889 = vpop.f32.mrf.mxu0
  %890 = vmatprep.mubr.bf16.mxu0 %v485
  %891 = vmatmul.mubr.bf16.gmra.mxu0 %v484
  %v892 = vpop.f32.mrf.mxu0
  %v893 = vadd.f32 0.0, %v892
  %v894 = vpop.f32.mrf.mxu0
  %v895 = vpop.f32.mrf.mxu0
  %v896 = vadd.f32 0.0, %v895
  %v897 = vpop.f32.mrf.mxu0
  %898 = vmatprep.mubr.bf16.mxu0 %v487
  %899 = vmatmul.mubr.bf16.gmra.mxu0 %v486
  %v900 = vpop.f32.mrf.mxu0
  %v901 = vadd.f32 0.0, %v900
  %v902 = vpop.f32.mrf.mxu0
  %v903 = vpop.f32.mrf.mxu0
  %v904 = vadd.f32 0.0, %v903
  %v905 = vpop.f32.mrf.mxu0
  %906 = vmatprep.mubr.bf16.mxu0 %v489
  %907 = vmatmul.mubr.bf16.gmra.mxu0 %v488
  %v908 = vpop.f32.mrf.mxu0
  %v909 = vadd.f32 0.0, %v908
  %v910 = vpop.f32.mrf.mxu0
  %v911 = vpop.f32.mrf.mxu0
  %v912 = vadd.f32 0.0, %v911
  %v913 = vpop.f32.mrf.mxu0
  %914 = vmatprep.mubr.bf16.mxu0 %v491
  %915 = vmatmul.mubr.bf16.gmra.mxu0 %v490
  %v916 = vpop.f32.mrf.mxu0
  %v917 = vadd.f32 0.0, %v916
  %v918 = vpop.f32.mrf.mxu0
  %v919 = vpop.f32.mrf.mxu0
  %v920 = vadd.f32 0.0, %v919
  %v921 = vpop.f32.mrf.mxu0
  %922 = vmatprep.mubr.bf16.mxu0 %v493
  %923 = vmatmul.mubr.bf16.gmra.mxu0 %v492
  %v924 = vpop.f32.mrf.mxu0
  %v925 = vadd.f32 0.0, %v924
  %v926 = vpop.f32.mrf.mxu0
  %v927 = vpop.f32.mrf.mxu0
  %v928 = vadd.f32 0.0, %v927
  %v929 = vpop.f32.mrf.mxu0
  %930 = vmatprep.mubr.bf16.mxu0 %v495
  %931 = vmatmul.mubr.bf16.gmra.mxu0 %v494
  %v932 = vpop.f32.mrf.mxu0
  %v933 = vadd.f32 0.0, %v932
  %v934 = vpop.f32.mrf.mxu0
  %v935 = vpop.f32.mrf.mxu0
  %v936 = vadd.f32 0.0, %v935
  %v937 = vpop.f32.mrf.mxu0
  %938 = vmatprep.mubr.bf16.mxu0 %v497
  %939 = vmatmul.mubr.bf16.gmra.mxu0 %v496
  %v940 = vpop.f32.mrf.mxu0
  %v941 = vadd.f32 0.0, %v940
  %v942 = vpop.f32.mrf.mxu0
  %v943 = vpop.f32.mrf.mxu0
  %v944 = vadd.f32 0.0, %v943
  %v945 = vpop.f32.mrf.mxu0
  %946 = vdwg.mxu0
  %v947 = vadd.f32 %v82, %v693
  %v948 = vadd.f32 %v83, %v696
  %v949 = vadd.f32 %v84, %v701
  %v950 = vadd.f32 %v85, %v704
  %v951 = vadd.f32 %v86, %v709
  %v952 = vadd.f32 %v87, %v712
  %v953 = vadd.f32 %v88, %v717
  %v954 = vadd.f32 %v89, %v720
  %v955 = vadd.f32 %v90, %v725
  %v956 = vadd.f32 %v91, %v728
  %v957 = vadd.f32 %v92, %v733
  %v958 = vadd.f32 %v93, %v736
  %v959 = vadd.f32 %v94, %v741
  %v960 = vadd.f32 %v95, %v744
  %v961 = vadd.f32 %v96, %v749
  %v962 = vadd.f32 %v97, %v752
  %v963 = vadd.f32 %v98, %v757
  %v964 = vadd.f32 %v99, %v760
  %v965 = vadd.f32 %v100, %v765
  %v966 = vadd.f32 %v101, %v768
  %v967 = vadd.f32 %v102, %v773
  %v968 = vadd.f32 %v103, %v776
  %v969 = vadd.f32 %v104, %v781
  %v970 = vadd.f32 %v105, %v784
  %v971 = vadd.f32 %v106, %v789
  %v972 = vadd.f32 %v107, %v792
  %v973 = vadd.f32 %v108, %v797
  %v974 = vadd.f32 %v109, %v800
  %v975 = vadd.f32 %v110, %v805
  %v976 = vadd.f32 %v111, %v808
  %v977 = vadd.f32 %v112, %v813
  %v978 = vadd.f32 %v113, %v816
  %v979 = vadd.f32 %v114, %v821
  %v980 = vadd.f32 %v115, %v824
  %v981 = vadd.f32 %v116, %v829
  %v982 = vadd.f32 %v117, %v832
  %v983 = vadd.f32 %v118, %v837
  %v984 = vadd.f32 %v119, %v840
  %v985 = vadd.f32 %v120, %v845
  %v986 = vadd.f32 %v121, %v848
  %v987 = vadd.f32 %v122, %v853
  %v988 = vadd.f32 %v123, %v856
  %v989 = vadd.f32 %v124, %v861
  %v990 = vadd.f32 %v125, %v864
  %v991 = vadd.f32 %v126, %v869
  %v992 = vadd.f32 %v127, %v872
  %v993 = vadd.f32 %v128, %v877
  %v994 = vadd.f32 %v129, %v880
  %v995 = vadd.f32 %v130, %v885
  %v996 = vadd.f32 %v131, %v888
  %v997 = vadd.f32 %v132, %v893
  %v998 = vadd.f32 %v133, %v896
  %v999 = vadd.f32 %v134, %v901
  %v1000 = vadd.f32 %v135, %v904
  %v1001 = vadd.f32 %v136, %v909
  %v1002 = vadd.f32 %v137, %v912
  %v1003 = vadd.f32 %v138, %v917
  %v1004 = vadd.f32 %v139, %v920
  %v1005 = vadd.f32 %v140, %v925
  %v1006 = vadd.f32 %v141, %v928
  %v1007 = vadd.f32 %v142, %v933
  %v1008 = vadd.f32 %v143, %v936
  %v1009 = vadd.f32 %v144, %v941
  %v1010 = vadd.f32 %v145, %v944
  %1011 = vst [vmem:[#allocation2] sm:$0xff] %v947
  %1012 = vst [vmem:[#allocation2 + $0x8] sm:$0xff] %v948
  %1013 = vst [vmem:[#allocation2 + $0x10] sm:$0xff] %v949
  %1014 = vst [vmem:[#allocation2 + $0x18] sm:$0xff] %v950
  %1015 = vst [vmem:[#allocation2 + $0x20] sm:$0xff] %v951
  %1016 = vst [vmem:[#allocation2 + $0x28] sm:$0xff] %v952
  %1017 = vst [vmem:[#allocation2 + $0x30] sm:$0xff] %v953
  %1018 = vst [vmem:[#allocation2 + $0x38] sm:$0xff] %v954
  %1019 = vst [vmem:[#allocation2 + $0x40] sm:$0xff] %v955
  %1020 = vst [vmem:[#allocation2 + $0x48] sm:$0xff] %v956
  %1021 = vst [vmem:[#allocation2 + $0x50] sm:$0xff] %v957
  %1022 = vst [vmem:[#allocation2 + $0x58] sm:$0xff] %v958
  %1023 = vst [vmem:[#allocation2 + $0x60] sm:$0xff] %v959
  %1024 = vst [vmem:[#allocation2 + $0x68] sm:$0xff] %v960
  %1025 = vst [vmem:[#allocation2 + $0x70] sm:$0xff] %v961
  %1026 = vst [vmem:[#allocation2 + $0x78] sm:$0xff] %v962
  %1027 = vst [vmem:[#allocation2 + $0x80] sm:$0xff] %v963
  %1028 = vst [vmem:[#allocation2 + $0x88] sm:$0xff] %v964
  %1029 = vst [vmem:[#allocation2 + $0x90] sm:$0xff] %v965
  %1030 = vst [vmem:[#allocation2 + $0x98] sm:$0xff] %v966
  %1031 = vst [vmem:[#allocation2 + $0xa0] sm:$0xff] %v967
  %1032 = vst [vmem:[#allocation2 + $0xa8] sm:$0xff] %v968
  %1033 = vst [vmem:[#allocation2 + $0xb0] sm:$0xff] %v969
  %1034 = vst [vmem:[#allocation2 + $0xb8] sm:$0xff] %v970
  %1035 = vst [vmem:[#allocation2 + $0xc0] sm:$0xff] %v971
  %1036 = vst [vmem:[#allocation2 + $0xc8] sm:$0xff] %v972
  %1037 = vst [vmem:[#allocation2 + $0xd0] sm:$0xff] %v973
  %1038 = vst [vmem:[#allocation2 + $0xd8] sm:$0xff] %v974
  %1039 = vst [vmem:[#allocation2 + $0xe0] sm:$0xff] %v975
  %1040 = vst [vmem:[#allocation2 + $0xe8] sm:$0xff] %v976
  %1041 = vst [vmem:[#allocation2 + $0xf0] sm:$0xff] %v977
  %1042 = vst [vmem:[#allocation2 + $0xf8] sm:$0xff] %v978
  %1043 = vst [vmem:[#allocation2 + $0x100] sm:$0xff] %v979
  %1044 = vst [vmem:[#allocation2 + $0x108] sm:$0xff] %v980
  %1045 = vst [vmem:[#allocation2 + $0x110] sm:$0xff] %v981
  %1046 = vst [vmem:[#allocation2 + $0x118] sm:$0xff] %v982
  %1047 = vst [vmem:[#allocation2 + $0x120] sm:$0xff] %v983
  %1048 = vst [vmem:[#allocation2 + $0x128] sm:$0xff] %v984
  %1049 = vst [vmem:[#allocation2 + $0x130] sm:$0xff] %v985
  %1050 = vst [vmem:[#allocation2 + $0x138] sm:$0xff] %v986
  %1051 = vst [vmem:[#allocation2 + $0x140] sm:$0xff] %v987
  %1052 = vst [vmem:[#allocation2 + $0x148] sm:$0xff] %v988
  %1053 = vst [vmem:[#allocation2 + $0x150] sm:$0xff] %v989
  %1054 = vst [vmem:[#allocation2 + $0x158] sm:$0xff] %v990
  %1055 = vst [vmem:[#allocation2 + $0x160] sm:$0xff] %v991
  %1056 = vst [vmem:[#allocation2 + $0x168] sm:$0xff] %v992
  %1057 = vst [vmem:[#allocation2 + $0x170] sm:$0xff] %v993
  %1058 = vst [vmem:[#allocation2 + $0x178] sm:$0xff] %v994
  %1059 = vst [vmem:[#allocation2 + $0x180] sm:$0xff] %v995
  %1060 = vst [vmem:[#allocation2 + $0x188] sm:$0xff] %v996
  %1061 = vst [vmem:[#allocation2 + $0x190] sm:$0xff] %v997
  %1062 = vst [vmem:[#allocation2 + $0x198] sm:$0xff] %v998
  %1063 = vst [vmem:[#allocation2 + $0x1a0] sm:$0xff] %v999
  %1064 = vst [vmem:[#allocation2 + $0x1a8] sm:$0xff] %v1000
  %1065 = vst [vmem:[#allocation2 + $0x1b0] sm:$0xff] %v1001
  %1066 = vst [vmem:[#allocation2 + $0x1b8] sm:$0xff] %v1002
  %1067 = vst [vmem:[#allocation2 + $0x1c0] sm:$0xff] %v1003
  %1068 = vst [vmem:[#allocation2 + $0x1c8] sm:$0xff] %v1004
  %1069 = vst [vmem:[#allocation2 + $0x1d0] sm:$0xff] %v1005
  %1070 = vst [vmem:[#allocation2 + $0x1d8] sm:$0xff] %v1006
  %1071 = vst [vmem:[#allocation2 + $0x1e0] sm:$0xff] %v1007
  %1072 = vst [vmem:[#allocation2 + $0x1e8] sm:$0xff] %v1008
  %1073 = vst [vmem:[#allocation2 + $0x1f0] sm:$0xff] %v1009
  %1074 = vst [vmem:[#allocation2 + $0x1f8] sm:$0xff] %v1010
  // Predicated region
  $region14: #{_conv_bn.2} parent=0 // pred_check
    %p1075 = pneg %p14
  $region15: #{_conv_bn.2} parent=0 // pred_check_branch
    %1077 = sbr.rel (%p1075) target = $region17
  $region16: #{_conv_bn.2} parent=0 // pred_region
    %v1078 = vld [vmem:[#allocation2] sm:$0xff]
    %v1079 = vld [vmem:[#allocation2 + $0x8] sm:$0xff]
    %v1080 = vld [vmem:[#allocation2 + $0x10] sm:$0xff]
    %v1081 = vld [vmem:[#allocation2 + $0x18] sm:$0xff]
    %v1082 = vld [vmem:[#allocation2 + $0x20] sm:$0xff]
    %v1083 = vld [vmem:[#allocation2 + $0x28] sm:$0xff]
    %v1084 = vld [vmem:[#allocation2 + $0x30] sm:$0xff]
    %v1085 = vld [vmem:[#allocation2 + $0x38] sm:$0xff]
    %v1086 = vld [vmem:[#allocation2 + $0x40] sm:$0xff]
    %v1087 = vld [vmem:[#allocation2 + $0x48] sm:$0xff]
    %v1088 = vld [vmem:[#allocation2 + $0x50] sm:$0xff]
    %v1089 = vld [vmem:[#allocation2 + $0x58] sm:$0xff]
    %v1090 = vld [vmem:[#allocation2 + $0x60] sm:$0xff]
    %v1091 = vld [vmem:[#allocation2 + $0x68] sm:$0xff]
    %v1092 = vld [vmem:[#allocation2 + $0x70] sm:$0xff]
    %v1093 = vld [vmem:[#allocation2 + $0x78] sm:$0xff]
    %v1094 = vld [vmem:[#allocation2 + $0x80] sm:$0xff]
    %v1095 = vld [vmem:[#allocation2 + $0x88] sm:$0xff]
    %v1096 = vld [vmem:[#allocation2 + $0x90] sm:$0xff]
    %v1097 = vld [vmem:[#allocation2 + $0x98] sm:$0xff]
    %v1098 = vld [vmem:[#allocation2 + $0xa0] sm:$0xff]
    %v1099 = vld [vmem:[#allocation2 + $0xa8] sm:$0xff]
    %v1100 = vld [vmem:[#allocation2 + $0xb0] sm:$0xff]
    %v1101 = vld [vmem:[#allocation2 + $0xb8] sm:$0xff]
    %v1102 = vld [vmem:[#allocation2 + $0xc0] sm:$0xff]
    %v1103 = vld [vmem:[#allocation2 + $0xc8] sm:$0xff]
    %v1104 = vld [vmem:[#allocation2 + $0xd0] sm:$0xff]
    %v1105 = vld [vmem:[#allocation2 + $0xd8] sm:$0xff]
    %v1106 = vld [vmem:[#allocation2 + $0xe0] sm:$0xff]
    %v1107 = vld [vmem:[#allocation2 + $0xe8] sm:$0xff]
    %v1108 = vld [vmem:[#allocation2 + $0xf0] sm:$0xff]
    %v1109 = vld [vmem:[#allocation2 + $0xf8] sm:$0xff]
    %v1110 = vld [vmem:[#allocation2 + $0x100] sm:$0xff]
    %v1111 = vld [vmem:[#allocation2 + $0x108] sm:$0xff]
    %v1112 = vld [vmem:[#allocation2 + $0x110] sm:$0xff]
    %v1113 = vld [vmem:[#allocation2 + $0x118] sm:$0xff]
    %v1114 = vld [vmem:[#allocation2 + $0x120] sm:$0xff]
    %v1115 = vld [vmem:[#allocation2 + $0x128] sm:$0xff]
    %v1116 = vld [vmem:[#allocation2 + $0x130] sm:$0xff]
    %v1117 = vld [vmem:[#allocation2 + $0x138] sm:$0xff]
    %v1118 = vld [vmem:[#allocation2 + $0x140] sm:$0xff]
    %v1119 = vld [vmem:[#allocation2 + $0x148] sm:$0xff]
    %v1120 = vld [vmem:[#allocation2 + $0x150] sm:$0xff]
    %v1121 = vld [vmem:[#allocation2 + $0x158] sm:$0xff]
    %v1122 = vld [vmem:[#allocation2 + $0x160] sm:$0xff]
    %v1123 = vld [vmem:[#allocation2 + $0x168] sm:$0xff]
    %v1124 = vld [vmem:[#allocation2 + $0x170] sm:$0xff]
    %v1125 = vld [vmem:[#allocation2 + $0x178] sm:$0xff]
    %v1126 = vld [vmem:[#allocation2 + $0x180] sm:$0xff]
    %v1127 = vld [vmem:[#allocation2 + $0x188] sm:$0xff]
    %v1128 = vld [vmem:[#allocation2 + $0x190] sm:$0xff]
    %v1129 = vld [vmem:[#allocation2 + $0x198] sm:$0xff]
    %v1130 = vld [vmem:[#allocation2 + $0x1a0] sm:$0xff]
    %v1131 = vld [vmem:[#allocation2 + $0x1a8] sm:$0xff]
    %v1132 = vld [vmem:[#allocation2 + $0x1b0] sm:$0xff]
    %v1133 = vld [vmem:[#allocation2 + $0x1b8] sm:$0xff]
    %v1134 = vld [vmem:[#allocation2 + $0x1c0] sm:$0xff]
    %v1135 = vld [vmem:[#allocation2 + $0x1c8] sm:$0xff]
    %v1136 = vld [vmem:[#allocation2 + $0x1d0] sm:$0xff]
    %v1137 = vld [vmem:[#allocation2 + $0x1d8] sm:$0xff]
    %v1138 = vld [vmem:[#allocation2 + $0x1e0] sm:$0xff]
    %v1139 = vld [vmem:[#allocation2 + $0x1e8] sm:$0xff]
    %v1140 = vld [vmem:[#allocation2 + $0x1f0] sm:$0xff]
    %v1141 = vld [vmem:[#allocation2 + $0x1f8] sm:$0xff]
    %1142 = vst [vmem:[%s2] sm:$0xff] %v1078
    %1143 = vst [vmem:[%s2 + $0x8] sm:$0xff] %v1079
    %1144 = vst [vmem:[%s2 + $0x10] sm:$0xff] %v1080
    %1145 = vst [vmem:[%s2 + $0x18] sm:$0xff] %v1081
    %1146 = vst [vmem:[%s2 + $0x20] sm:$0xff] %v1082
    %1147 = vst [vmem:[%s2 + $0x28] sm:$0xff] %v1083
    %1148 = vst [vmem:[%s2 + $0x30] sm:$0xff] %v1084
    %1149 = vst [vmem:[%s2 + $0x38] sm:$0xff] %v1085
    %1150 = vst [vmem:[%s2 + $0x40] sm:$0xff] %v1086
    %1151 = vst [vmem:[%s2 + $0x48] sm:$0xff] %v1087
    %1152 = vst [vmem:[%s2 + $0x50] sm:$0xff] %v1088
    %1153 = vst [vmem:[%s2 + $0x58] sm:$0xff] %v1089
    %1154 = vst [vmem:[%s2 + $0x60] sm:$0xff] %v1090
    %1155 = vst [vmem:[%s2 + $0x68] sm:$0xff] %v1091
    %1156 = vst [vmem:[%s2 + $0x70] sm:$0xff] %v1092
    %1157 = vst [vmem:[%s2 + $0x78] sm:$0xff] %v1093
    %1158 = vst [vmem:[%s2 + $0x80] sm:$0xff] %v1094
    %1159 = vst [vmem:[%s2 + $0x88] sm:$0xff] %v1095
    %1160 = vst [vmem:[%s2 + $0x90] sm:$0xff] %v1096
    %1161 = vst [vmem:[%s2 + $0x98] sm:$0xff] %v1097
    %1162 = vst [vmem:[%s2 + $0xa0] sm:$0xff] %v1098
    %1163 = vst [vmem:[%s2 + $0xa8] sm:$0xff] %v1099
    %1164 = vst [vmem:[%s2 + $0xb0] sm:$0xff] %v1100
    %1165 = vst [vmem:[%s2 + $0xb8] sm:$0xff] %v1101
    %1166 = vst [vmem:[%s2 + $0xc0] sm:$0xff] %v1102
    %1167 = vst [vmem:[%s2 + $0xc8] sm:$0xff] %v1103
    %1168 = vst [vmem:[%s2 + $0xd0] sm:$0xff] %v1104
    %1169 = vst [vmem:[%s2 + $0xd8] sm:$0xff] %v1105
    %1170 = vst [vmem:[%s2 + $0xe0] sm:$0xff] %v1106
    %1171 = vst [vmem:[%s2 + $0xe8] sm:$0xff] %v1107
    %1172 = vst [vmem:[%s2 + $0xf0] sm:$0xff] %v1108
    %1173 = vst [vmem:[%s2 + $0xf8] sm:$0xff] %v1109
    %1174 = vst [vmem:[%s2 + $0x100] sm:$0xff] %v1110
    %1175 = vst [vmem:[%s2 + $0x108] sm:$0xff] %v1111
    %1176 = vst [vmem:[%s2 + $0x110] sm:$0xff] %v1112
    %1177 = vst [vmem:[%s2 + $0x118] sm:$0xff] %v1113
    %1178 = vst [vmem:[%s2 + $0x120] sm:$0xff] %v1114
    %1179 = vst [vmem:[%s2 + $0x128] sm:$0xff] %v1115
    %1180 = vst [vmem:[%s2 + $0x130] sm:$0xff] %v1116
    %1181 = vst [vmem:[%s2 + $0x138] sm:$0xff] %v1117
    %1182 = vst [vmem:[%s2 + $0x140] sm:$0xff] %v1118
    %1183 = vst [vmem:[%s2 + $0x148] sm:$0xff] %v1119
    %1184 = vst [vmem:[%s2 + $0x150] sm:$0xff] %v1120
    %1185 = vst [vmem:[%s2 + $0x158] sm:$0xff] %v1121
    %1186 = vst [vmem:[%s2 + $0x160] sm:$0xff] %v1122
    %1187 = vst [vmem:[%s2 + $0x168] sm:$0xff] %v1123
    %1188 = vst [vmem:[%s2 + $0x170] sm:$0xff] %v1124
    %1189 = vst [vmem:[%s2 + $0x178] sm:$0xff] %v1125
    %1190 = vst [vmem:[%s2 + $0x180] sm:$0xff] %v1126
    %1191 = vst [vmem:[%s2 + $0x188] sm:$0xff] %v1127
    %1192 = vst [vmem:[%s2 + $0x190] sm:$0xff] %v1128
    %1193 = vst [vmem:[%s2 + $0x198] sm:$0xff] %v1129
    %1194 = vst [vmem:[%s2 + $0x1a0] sm:$0xff] %v1130
    %1195 = vst [vmem:[%s2 + $0x1a8] sm:$0xff] %v1131
    %1196 = vst [vmem:[%s2 + $0x1b0] sm:$0xff] %v1132
    %1197 = vst [vmem:[%s2 + $0x1b8] sm:$0xff] %v1133
    %1198 = vst [vmem:[%s2 + $0x1c0] sm:$0xff] %v1134
    %1199 = vst [vmem:[%s2 + $0x1c8] sm:$0xff] %v1135
    %1200 = vst [vmem:[%s2 + $0x1d0] sm:$0xff] %v1136
    %1201 = vst [vmem:[%s2 + $0x1d8] sm:$0xff] %v1137
    %1202 = vst [vmem:[%s2 + $0x1e0] sm:$0xff] %v1138
    %1203 = vst [vmem:[%s2 + $0x1e8] sm:$0xff] %v1139
    %1204 = vst [vmem:[%s2 + $0x1f0] sm:$0xff] %v1140
    %1205 = vst [vmem:[%s2 + $0x1f8] sm:$0xff] %v1141
    %v1206 = vadd.f32 %v1078, %v1079
    %v1207 = vadd.f32 %v1206, %v1080
    %v1208 = vadd.f32 %v1207, %v1081
    %v1209 = vadd.f32 %v1208, %v1082
    %v1210 = vadd.f32 %v1209, %v1083
    %v1211 = vadd.f32 %v1210, %v1084
    %v1212 = vadd.f32 %v1211, %v1085
    %v1213 = vadd.f32 %v1212, %v1086
    %v1214 = vadd.f32 %v1213, %v1087
    %v1215 = vadd.f32 %v1214, %v1088
    %v1216 = vadd.f32 %v1215, %v1089
    %v1217 = vadd.f32 %v1216, %v1090
    %v1218 = vadd.f32 %v1217, %v1091
    %v1219 = vadd.f32 %v1218, %v1092
    %v1220 = vadd.f32 %v1219, %v1093
    %v1221 = vadd.f32 %v1220, %v1094
    %v1222 = vadd.f32 %v1221, %v1095
    %v1223 = vadd.f32 %v1222, %v1096
    %v1224 = vadd.f32 %v1223, %v1097
    %v1225 = vadd.f32 %v1224, %v1098
    %v1226 = vadd.f32 %v1225, %v1099
    %v1227 = vadd.f32 %v1226, %v1100
    %v1228 = vadd.f32 %v1227, %v1101
    %v1229 = vadd.f32 %v1228, %v1102
    %v1230 = vadd.f32 %v1229, %v1103
    %v1231 = vadd.f32 %v1230, %v1104
    %v1232 = vadd.f32 %v1231, %v1105
    %v1233 = vadd.f32 %v1232, %v1106
    %v1234 = vadd.f32 %v1233, %v1107
    %v1235 = vadd.f32 %v1234, %v1108
    %v1236 = vadd.f32 %v1235, %v1109
    %v1237 = vadd.f32 %v1236, %v1110
    %v1238 = vadd.f32 %v1237, %v1111
    %v1239 = vadd.f32 %v1238, %v1112
    %v1240 = vadd.f32 %v1239, %v1113
    %v1241 = vadd.f32 %v1240, %v1114
    %v1242 = vadd.f32 %v1241, %v1115
    %v1243 = vadd.f32 %v1242, %v1116
    %v1244 = vadd.f32 %v1243, %v1117
    %v1245 = vadd.f32 %v1244, %v1118
    %v1246 = vadd.f32 %v1245, %v1119
    %v1247 = vadd.f32 %v1246, %v1120
    %v1248 = vadd.f32 %v1247, %v1121
    %v1249 = vadd.f32 %v1248, %v1122
    %v1250 = vadd.f32 %v1249, %v1123
    %v1251 = vadd.f32 %v1250, %v1124
    %v1252 = vadd.f32 %v1251, %v1125
    %v1253 = vadd.f32 %v1252, %v1126
    %v1254 = vadd.f32 %v1253, %v1127
    %v1255 = vadd.f32 %v1254, %v1128
    %v1256 = vadd.f32 %v1255, %v1129
    %v1257 = vadd.f32 %v1256, %v1130
    %v1258 = vadd.f32 %v1257, %v1131
    %v1259 = vadd.f32 %v1258, %v1132
    %v1260 = vadd.f32 %v1259, %v1133
    %v1261 = vadd.f32 %v1260, %v1134
    %v1262 = vadd.f32 %v1261, %v1135
    %v1263 = vadd.f32 %v1262, %v1136
    %v1264 = vadd.f32 %v1263, %v1137
    %v1265 = vadd.f32 %v1264, %v1138
    %v1266 = vadd.f32 %v1265, %v1139
    %v1267 = vadd.f32 %v1266, %v1140
    %v1268 = vadd.f32 %v1267, %v1141
    %v1269 = vrot.slane %v1268, 4
    %v1270 = vadd.f32 %v1268, %v1269
    %v1271 = vrot.slane %v1270, 2
    %v1272 = vadd.f32 %v1270, %v1271
    %v1273 = vrot.slane %v1272, 1
    %v1274 = vadd.f32 %v1272, %v1273
    %v1275 = vmul.f32 %v1078, %v1078
    %v1276 = vmul.f32 %v1079, %v1079
    %v1277 = vmul.f32 %v1080, %v1080
    %v1278 = vmul.f32 %v1081, %v1081
    %v1279 = vmul.f32 %v1082, %v1082
    %v1280 = vmul.f32 %v1083, %v1083
    %v1281 = vmul.f32 %v1084, %v1084
    %v1282 = vmul.f32 %v1085, %v1085
    %v1283 = vmul.f32 %v1086, %v1086
    %v1284 = vmul.f32 %v1087, %v1087
    %v1285 = vmul.f32 %v1088, %v1088
    %v1286 = vmul.f32 %v1089, %v1089
    %v1287 = vmul.f32 %v1090, %v1090
    %v1288 = vmul.f32 %v1091, %v1091
    %v1289 = vmul.f32 %v1092, %v1092
    %v1290 = vmul.f32 %v1093, %v1093
    %v1291 = vmul.f32 %v1094, %v1094
    %v1292 = vmul.f32 %v1095, %v1095
    %v1293 = vmul.f32 %v1096, %v1096
    %v1294 = vmul.f32 %v1097, %v1097
    %v1295 = vmul.f32 %v1098, %v1098
    %v1296 = vmul.f32 %v1099, %v1099
    %v1297 = vmul.f32 %v1100, %v1100
    %v1298 = vmul.f32 %v1101, %v1101
    %v1299 = vmul.f32 %v1102, %v1102
    %v1300 = vmul.f32 %v1103, %v1103
    %v1301 = vmul.f32 %v1104, %v1104
    %v1302 = vmul.f32 %v1105, %v1105
    %v1303 = vmul.f32 %v1106, %v1106
    %v1304 = vmul.f32 %v1107, %v1107
    %v1305 = vmul.f32 %v1108, %v1108
    %v1306 = vmul.f32 %v1109, %v1109
    %v1307 = vmul.f32 %v1110, %v1110
    %v1308 = vmul.f32 %v1111, %v1111
    %v1309 = vmul.f32 %v1112, %v1112
    %v1310 = vmul.f32 %v1113, %v1113
    %v1311 = vmul.f32 %v1114, %v1114
    %v1312 = vmul.f32 %v1115, %v1115
    %v1313 = vmul.f32 %v1116, %v1116
    %v1314 = vmul.f32 %v1117, %v1117
    %v1315 = vmul.f32 %v1118, %v1118
    %v1316 = vmul.f32 %v1119, %v1119
    %v1317 = vmul.f32 %v1120, %v1120
    %v1318 = vmul.f32 %v1121, %v1121
    %v1319 = vmul.f32 %v1122, %v1122
    %v1320 = vmul.f32 %v1123, %v1123
    %v1321 = vmul.f32 %v1124, %v1124
    %v1322 = vmul.f32 %v1125, %v1125
    %v1323 = vmul.f32 %v1126, %v1126
    %v1324 = vmul.f32 %v1127, %v1127
    %v1325 = vmul.f32 %v1128, %v1128
    %v1326 = vmul.f32 %v1129, %v1129
    %v1327 = vmul.f32 %v1130, %v1130
    %v1328 = vmul.f32 %v1131, %v1131
    %v1329 = vmul.f32 %v1132, %v1132
    %v1330 = vmul.f32 %v1133, %v1133
    %v1331 = vmul.f32 %v1134, %v1134
    %v1332 = vmul.f32 %v1135, %v1135
    %v1333 = vmul.f32 %v1136, %v1136
    %v1334 = vmul.f32 %v1137, %v1137
    %v1335 = vmul.f32 %v1138, %v1138
    %v1336 = vmul.f32 %v1139, %v1139
    %v1337 = vmul.f32 %v1140, %v1140
    %v1338 = vmul.f32 %v1141, %v1141
    %v1339 = vadd.f32 %v1275, %v1276
    %v1340 = vadd.f32 %v1339, %v1277
    %v1341 = vadd.f32 %v1340, %v1278
    %v1342 = vadd.f32 %v1341, %v1279
    %v1343 = vadd.f32 %v1342, %v1280
    %v1344 = vadd.f32 %v1343, %v1281
    %v1345 = vadd.f32 %v1344, %v1282
    %v1346 = vadd.f32 %v1345, %v1283
    %v1347 = vadd.f32 %v1346, %v1284
    %v1348 = vadd.f32 %v1347, %v1285
    %v1349 = vadd.f32 %v1348, %v1286
    %v1350 = vadd.f32 %v1349, %v1287
    %v1351 = vadd.f32 %v1350, %v1288
    %v1352 = vadd.f32 %v1351, %v1289
    %v1353 = vadd.f32 %v1352, %v1290
    %v1354 = vadd.f32 %v1353, %v1291
    %v1355 = vadd.f32 %v1354, %v1292
    %v1356 = vadd.f32 %v1355, %v1293
    %v1357 = vadd.f32 %v1356, %v1294
    %v1358 = vadd.f32 %v1357, %v1295
    %v1359 = vadd.f32 %v1358, %v1296
    %v1360 = vadd.f32 %v1359, %v1297
    %v1361 = vadd.f32 %v1360, %v1298
    %v1362 = vadd.f32 %v1361, %v1299
    %v1363 = vadd.f32 %v1362, %v1300
    %v1364 = vadd.f32 %v1363, %v1301
    %v1365 = vadd.f32 %v1364, %v1302
    %v1366 = vadd.f32 %v1365, %v1303
    %v1367 = vadd.f32 %v1366, %v1304
    %v1368 = vadd.f32 %v1367, %v1305
    %v1369 = vadd.f32 %v1368, %v1306
    %v1370 = vadd.f32 %v1369, %v1307
    %v1371 = vadd.f32 %v1370, %v1308
    %v1372 = vadd.f32 %v1371, %v1309
    %v1373 = vadd.f32 %v1372, %v1310
    %v1374 = vadd.f32 %v1373, %v1311
    %v1375 = vadd.f32 %v1374, %v1312
    %v1376 = vadd.f32 %v1375, %v1313
    %v1377 = vadd.f32 %v1376, %v1314
    %v1378 = vadd.f32 %v1377, %v1315
    %v1379 = vadd.f32 %v1378, %v1316
    %v1380 = vadd.f32 %v1379, %v1317
    %v1381 = vadd.f32 %v1380, %v1318
    %v1382 = vadd.f32 %v1381, %v1319
    %v1383 = vadd.f32 %v1382, %v1320
    %v1384 = vadd.f32 %v1383, %v1321
    %v1385 = vadd.f32 %v1384, %v1322
    %v1386 = vadd.f32 %v1385, %v1323
    %v1387 = vadd.f32 %v1386, %v1324
    %v1388 = vadd.f32 %v1387, %v1325
    %v1389 = vadd.f32 %v1388, %v1326
    %v1390 = vadd.f32 %v1389, %v1327
    %v1391 = vadd.f32 %v1390, %v1328
    %v1392 = vadd.f32 %v1391, %v1329
    %v1393 = vadd.f32 %v1392, %v1330
    %v1394 = vadd.f32 %v1393, %v1331
    %v1395 = vadd.f32 %v1394, %v1332
    %v1396 = vadd.f32 %v1395, %v1333
    %v1397 = vadd.f32 %v1396, %v1334
    %v1398 = vadd.f32 %v1397, %v1335
    %v1399 = vadd.f32 %v1398, %v1336
    %v1400 = vadd.f32 %v1399, %v1337
    %v1401 = vadd.f32 %v1400, %v1338
    %v1402 = vrot.slane %v1401, 4
    %v1403 = vadd.f32 %v1401, %v1402
    %v1404 = vrot.slane %v1403, 2
    %v1405 = vadd.f32 %v1403, %v1404
    %v1406 = vrot.slane %v1405, 1
    %v1407 = vadd.f32 %v1405, %v1406
    %v1408 = vlaneseq
    %v1409 = vshrl.u32 %v1408, 7
    %vm1410 = vcmp.eq.s32.totalorder %v1409, 0
    %vm1411 = vcmp.eq.s32.totalorder %v1409, 1
    %v1412 = vsel %vm1411, %v1407, 0.0
    %v1413 = vsel %vm1410, %v1274, %v1412
    %1414 = vst [vmem:[%s3] sm:$0xff] %v1413
  $region17: #{_conv_bn.2} parent=0 // pred_fallthru
    _
  // Predicated region
  $region18: #{_conv_bn.2} parent=0 // pred_check
    _
  $region19: #{_conv_bn.2} parent=0 // pred_check_branch
    %1416 = sbr.rel (0) target = $region21
  $region20: #{_conv_bn.2} parent=0 // pred_region
    _
  $region21: #{_conv_bn.2} parent=0 // pred_fallthru
    _
  // Predicated region
  $region22: #{_conv_bn.2} parent=0 // pred_check
    _
  $region23: #{_conv_bn.2} parent=0 // pred_check_branch
    %1418 = sbr.rel (0) target = $region25
  $region24: #{_conv_bn.2} parent=0 // pred_region
    _
  $region25: #{_conv_bn.2} parent=0 // pred_fallthru
    _
  // Predicated region
  $region26: #{_conv_bn.2} parent=0 // pred_check
    _
  $region27: #{_conv_bn.2} parent=0 // pred_check_branch
    %1420 = sbr.rel (0) target = $region29
  $region28: #{_conv_bn.2} parent=0 // pred_region
    _
  $region29: #{_conv_bn.2} parent=0 // pred_fallthru
    _
  // Predicated region
  $region30: #{_conv_bn.2} parent=0 // pred_check
    _
  $region31: #{_conv_bn.2} parent=0 // pred_check_branch
    %1422 = sbr.rel (0) target = $region33
  $region32: #{_conv_bn.2} parent=0 // pred_region
    _
  $region33: #{_conv_bn.2} parent=0 // pred_fallthru
    _

// kernel: _conv_bn.3
$region0: #{_conv_bn.3}
  #allocation0 [shape = 'u32[]', space=smem, size = 0x4, offset = 0x4, fixed_abs, tag = 'smem constant byte address 0x4 - core index']
  #allocation1 [shape = 'u32[144,128]{1,0:T(1,128)}', space=vmem, size = 0x12000, scoped, tag = 'internal scratch']
  %s0 = inlined_call_operand.vmem [shape: f32[512,128], index: 0, kind: input, shape index: {}]
  %s1 = inlined_call_operand.vmem [shape: f32[1,128], index: 1, kind: input, shape index: {}]
  %s2 = inlined_call_operand.vmem [shape: f32[1,128], index: 2, kind: input, shape index: {}]
  %s3 = inlined_call_operand.hbm [shape: bf16[512,128], index: 3, kind: output, shape index: {}]
  %s4 = sld [smem:[#allocation0]]
  $region22: #{_conv_bn.3} parent=0
    _
  %s6 = ssub.s32 1, %s4
  %s7 = scalar_select 0, %s6, %s4
  $region1: #{_conv_bn.3} parent=0
    #allocation2 [shape = 'u8[131072]{0}', space=vmem, size = 0x20000, scoped, tag = 'output window, operand 0, single buffered']
    #allocation3 [shape = 's32[1]{0}', space=sflag, size = 0x4, scoped, tag = 'scoped memory for _conv_bn.3']
    %8 = vsyncpa [#allocation3], 0
    // Predicated region
    $region2: #{_conv_bn.3} parent=1 // pred_check
      _
    $region3: #{_conv_bn.3} parent=1 // pred_check_branch
      %10 = sbr.rel (0) target = $region5
    $region4: #{_conv_bn.3} parent=1 // pred_region
      _
    $region5: #{_conv_bn.3} parent=1 // pred_fallthru
      _
    // Predicated region
    $region6: #{_conv_bn.3} parent=1 // pred_check
      _
    $region7: #{_conv_bn.3} parent=1 // pred_check_branch
      %12 = sbr.rel (0) target = $region9
    $region8: #{_conv_bn.3} parent=1 // pred_region
      _
    $region9: #{_conv_bn.3} parent=1 // pred_fallthru
      _
    // Predicated region
    $region10: #{_conv_bn.3} parent=1 // pred_check
      _
    $region11: #{_conv_bn.3} parent=1 // pred_check_branch
      %14 = sbr.rel (0) target = $region13
    $region12: #{_conv_bn.3} parent=1 // pred_region
      _
    $region13: #{_conv_bn.3} parent=1 // pred_fallthru
      _
    %v15 = vld [vmem:[%s0] sm:$0xff]
    %v16 = vld [vmem:[%s0 + $0x8] sm:$0xff]
    %v17 = vld [vmem:[%s0 + $0x10] sm:$0xff]
    %v18 = vld [vmem:[%s0 + $0x18] sm:$0xff]
    %v19 = vld [vmem:[%s0 + $0x20] sm:$0xff]
    %v20 = vld [vmem:[%s0 + $0x28] sm:$0xff]
    %v21 = vld [vmem:[%s0 + $0x30] sm:$0xff]
    %v22 = vld [vmem:[%s0 + $0x38] sm:$0xff]
    %v23 = vld [vmem:[%s0 + $0x40] sm:$0xff]
    %v24 = vld [vmem:[%s0 + $0x48] sm:$0xff]
    %v25 = vld [vmem:[%s0 + $0x50] sm:$0xff]
    %v26 = vld [vmem:[%s0 + $0x58] sm:$0xff]
    %v27 = vld [vmem:[%s0 + $0x60] sm:$0xff]
    %v28 = vld [vmem:[%s0 + $0x68] sm:$0xff]
    %v29 = vld [vmem:[%s0 + $0x70] sm:$0xff]
    %v30 = vld [vmem:[%s0 + $0x78] sm:$0xff]
    %v31 = vld [vmem:[%s0 + $0x80] sm:$0xff]
    %v32 = vld [vmem:[%s0 + $0x88] sm:$0xff]
    %v33 = vld [vmem:[%s0 + $0x90] sm:$0xff]
    %v34 = vld [vmem:[%s0 + $0x98] sm:$0xff]
    %v35 = vld [vmem:[%s0 + $0xa0] sm:$0xff]
    %v36 = vld [vmem:[%s0 + $0xa8] sm:$0xff]
    %v37 = vld [vmem:[%s0 + $0xb0] sm:$0xff]
    %v38 = vld [vmem:[%s0 + $0xb8] sm:$0xff]
    %v39 = vld [vmem:[%s0 + $0xc0] sm:$0xff]
    %v40 = vld [vmem:[%s0 + $0xc8] sm:$0xff]
    %v41 = vld [vmem:[%s0 + $0xd0] sm:$0xff]
    %v42 = vld [vmem:[%s0 + $0xd8] sm:$0xff]
    %v43 = vld [vmem:[%s0 + $0xe0] sm:$0xff]
    %v44 = vld [vmem:[%s0 + $0xe8] sm:$0xff]
    %v45 = vld [vmem:[%s0 + $0xf0] sm:$0xff]
    %v46 = vld [vmem:[%s0 + $0xf8] sm:$0xff]
    %v47 = vld [vmem:[%s0 + $0x100] sm:$0xff]
    %v48 = vld [vmem:[%s0 + $0x108] sm:$0xff]
    %v49 = vld [vmem:[%s0 + $0x110] sm:$0xff]
    %v50 = vld [vmem:[%s0 + $0x118] sm:$0xff]
    %v51 = vld [vmem:[%s0 + $0x120] sm:$0xff]
    %v52 = vld [vmem:[%s0 + $0x128] sm:$0xff]
    %v53 = vld [vmem:[%s0 + $0x130] sm:$0xff]
    %v54 = vld [vmem:[%s0 + $0x138] sm:$0xff]
    %v55 = vld [vmem:[%s0 + $0x140] sm:$0xff]
    %v56 = vld [vmem:[%s0 + $0x148] sm:$0xff]
    %v57 = vld [vmem:[%s0 + $0x150] sm:$0xff]
    %v58 = vld [vmem:[%s0 + $0x158] sm:$0xff]
    %v59 = vld [vmem:[%s0 + $0x160] sm:$0xff]
    %v60 = vld [vmem:[%s0 + $0x168] sm:$0xff]
    %v61 = vld [vmem:[%s0 + $0x170] sm:$0xff]
    %v62 = vld [vmem:[%s0 + $0x178] sm:$0xff]
    %v63 = vld [vmem:[%s0 + $0x180] sm:$0xff]
    %v64 = vld [vmem:[%s0 + $0x188] sm:$0xff]
    %v65 = vld [vmem:[%s0 + $0x190] sm:$0xff]
    %v66 = vld [vmem:[%s0 + $0x198] sm:$0xff]
    %v67 = vld [vmem:[%s0 + $0x1a0] sm:$0xff]
    %v68 = vld [vmem:[%s0 + $0x1a8] sm:$0xff]
    %v69 = vld [vmem:[%s0 + $0x1b0] sm:$0xff]
    %v70 = vld [vmem:[%s0 + $0x1b8] sm:$0xff]
    %v71 = vld [vmem:[%s0 + $0x1c0] sm:$0xff]
    %v72 = vld [vmem:[%s0 + $0x1c8] sm:$0xff]
    %v73 = vld [vmem:[%s0 + $0x1d0] sm:$0xff]
    %v74 = vld [vmem:[%s0 + $0x1d8] sm:$0xff]
    %v75 = vld [vmem:[%s0 + $0x1e0] sm:$0xff]
    %v76 = vld [vmem:[%s0 + $0x1e8] sm:$0xff]
    %v77 = vld [vmem:[%s0 + $0x1f0] sm:$0xff]
    %v78 = vld [vmem:[%s0 + $0x1f8] sm:$0xff]
    %v79 = vld [vmem:[%s1] sm:$0x1]
    %v81 = vlaneseq
    %v82 = vshrl.u32 %v81, 7
    %v83 = vsub.s32 0, %v82
    %v84 = vrot.slane %v79, %v83
    %v86 = vmul.f32 %v15, %v84
    %v87 = vmul.f32 %v16, %v84
    %v88 = vmul.f32 %v17, %v84
    %v89 = vmul.f32 %v18, %v84
    %v90 = vmul.f32 %v19, %v84
    %v91 = vmul.f32 %v20, %v84
    %v92 = vmul.f32 %v21, %v84
    %v93 = vmul.f32 %v22, %v84
    %v94 = vmul.f32 %v23, %v84
    %v95 = vmul.f32 %v24, %v84
    %v96 = vmul.f32 %v25, %v84
    %v97 = vmul.f32 %v26, %v84
    %v98 = vmul.f32 %v27, %v84
    %v99 = vmul.f32 %v28, %v84
    %v100 = vmul.f32 %v29, %v84
    %v101 = vmul.f32 %v30, %v84
    %v102 = vmul.f32 %v31, %v84
    %v103 = vmul.f32 %v32, %v84
    %v104 = vmul.f32 %v33, %v84
    %v105 = vmul.f32 %v34, %v84
    %v106 = vmul.f32 %v35, %v84
    %v107 = vmul.f32 %v36, %v84
    %v108 = vmul.f32 %v37, %v84
    %v109 = vmul.f32 %v38, %v84
    %v110 = vmul.f32 %v39, %v84
    %v111 = vmul.f32 %v40, %v84
    %v112 = vmul.f32 %v41, %v84
    %v113 = vmul.f32 %v42, %v84
    %v114 = vmul.f32 %v43, %v84
    %v115 = vmul.f32 %v44, %v84
    %v116 = vmul.f32 %v45, %v84
    %v117 = vmul.f32 %v46, %v84
    %v118 = vmul.f32 %v47, %v84
    %v119 = vmul.f32 %v48, %v84
    %v120 = vmul.f32 %v49, %v84
    %v121 = vmul.f32 %v50, %v84
    %v122 = vmul.f32 %v51, %v84
    %v123 = vmul.f32 %v52, %v84
    %v124 = vmul.f32 %v53, %v84
    %v125 = vmul.f32 %v54, %v84
    %v126 = vmul.f32 %v55, %v84
    %v127 = vmul.f32 %v56, %v84
    %v128 = vmul.f32 %v57, %v84
    %v129 = vmul.f32 %v58, %v84
    %v130 = vmul.f32 %v59, %v84
    %v131 = vmul.f32 %v60, %v84
    %v132 = vmul.f32 %v61, %v84
    %v133 = vmul.f32 %v62, %v84
    %v134 = vmul.f32 %v63, %v84
    %v135 = vmul.f32 %v64, %v84
    %v136 = vmul.f32 %v65, %v84
    %v137 = vmul.f32 %v66, %v84
    %v138 = vmul.f32 %v67, %v84
    %v139 = vmul.f32 %v68, %v84
    %v140 = vmul.f32 %v69, %v84
    %v141 = vmul.f32 %v70, %v84
    %v142 = vmul.f32 %v71, %v84
    %v143 = vmul.f32 %v72, %v84
    %v144 = vmul.f32 %v73, %v84
    %v145 = vmul.f32 %v74, %v84
    %v146 = vmul.f32 %v75, %v84
    %v147 = vmul.f32 %v76, %v84
    %v148 = vmul.f32 %v77, %v84
    %v149 = vmul.f32 %v78, %v84
    %v150 = vld [vmem:[%s2] sm:$0x1]
    %v152 = vlaneseq
    %v153 = vshrl.u32 %v152, 7
    %v154 = vsub.s32 0, %v153
    %v155 = vrot.slane %v150, %v154
    %v157 = vadd.f32 %v86, %v155
    %v158 = vadd.f32 %v87, %v155
    %v159 = vadd.f32 %v88, %v155
    %v160 = vadd.f32 %v89, %v155
    %v161 = vadd.f32 %v90, %v155
    %v162 = vadd.f32 %v91, %v155
    %v163 = vadd.f32 %v92, %v155
    %v164 = vadd.f32 %v93, %v155
    %v165 = vadd.f32 %v94, %v155
    %v166 = vadd.f32 %v95, %v155
    %v167 = vadd.f32 %v96, %v155
    %v168 = vadd.f32 %v97, %v155
    %v169 = vadd.f32 %v98, %v155
    %v170 = vadd.f32 %v99, %v155
    %v171 = vadd.f32 %v100, %v155
    %v172 = vadd.f32 %v101, %v155
    %v173 = vadd.f32 %v102, %v155
    %v174 = vadd.f32 %v103, %v155
    %v175 = vadd.f32 %v104, %v155
    %v176 = vadd.f32 %v105, %v155
    %v177 = vadd.f32 %v106, %v155
    %v178 = vadd.f32 %v107, %v155
    %v179 = vadd.f32 %v108, %v155
    %v180 = vadd.f32 %v109, %v155
    %v181 = vadd.f32 %v110, %v155
    %v182 = vadd.f32 %v111, %v155
    %v183 = vadd.f32 %v112, %v155
    %v184 = vadd.f32 %v113, %v155
    %v185 = vadd.f32 %v114, %v155
    %v186 = vadd.f32 %v115, %v155
    %v187 = vadd.f32 %v116, %v155
    %v188 = vadd.f32 %v117, %v155
    %v189 = vadd.f32 %v118, %v155
    %v190 = vadd.f32 %v119, %v155
    %v191 = vadd.f32 %v120, %v155
    %v192 = vadd.f32 %v121, %v155
    %v193 = vadd.f32 %v122, %v155
    %v194 = vadd.f32 %v123, %v155
    %v195 = vadd.f32 %v124, %v155
    %v196 = vadd.f32 %v125, %v155
    %v197 = vadd.f32 %v126, %v155
    %v198 = vadd.f32 %v127, %v155
    %v199 = vadd.f32 %v128, %v155
    %v200 = vadd.f32 %v129, %v155
    %v201 = vadd.f32 %v130, %v155
    %v202 = vadd.f32 %v131, %v155
    %v203 = vadd.f32 %v132, %v155
    %v204 = vadd.f32 %v133, %v155
    %v205 = vadd.f32 %v134, %v155
    %v206 = vadd.f32 %v135, %v155
    %v207 = vadd.f32 %v136, %v155
    %v208 = vadd.f32 %v137, %v155
    %v209 = vadd.f32 %v138, %v155
    %v210 = vadd.f32 %v139, %v155
    %v211 = vadd.f32 %v140, %v155
    %v212 = vadd.f32 %v141, %v155
    %v213 = vadd.f32 %v142, %v155
    %v214 = vadd.f32 %v143, %v155
    %v215 = vadd.f32 %v144, %v155
    %v216 = vadd.f32 %v145, %v155
    %v217 = vadd.f32 %v146, %v155
    %v218 = vadd.f32 %v147, %v155
    %v219 = vadd.f32 %v148, %v155
    %v220 = vadd.f32 %v149, %v155
    %v221 = vmax.f32 %v157, 0.0
    %v222 = vmax.f32 %v158, 0.0
    %v223 = vmax.f32 %v159, 0.0
    %v224 = vmax.f32 %v160, 0.0
    %v225 = vmax.f32 %v161, 0.0
    %v226 = vmax.f32 %v162, 0.0
    %v227 = vmax.f32 %v163, 0.0
    %v228 = vmax.f32 %v164, 0.0
    %v229 = vmax.f32 %v165, 0.0
    %v230 = vmax.f32 %v166, 0.0
    %v231 = vmax.f32 %v167, 0.0
    %v232 = vmax.f32 %v168, 0.0
    %v233 = vmax.f32 %v169, 0.0
    %v234 = vmax.f32 %v170, 0.0
    %v235 = vmax.f32 %v171, 0.0
    %v236 = vmax.f32 %v172, 0.0
    %v237 = vmax.f32 %v173, 0.0
    %v238 = vmax.f32 %v174, 0.0
    %v239 = vmax.f32 %v175, 0.0
    %v240 = vmax.f32 %v176, 0.0
    %v241 = vmax.f32 %v177, 0.0
    %v242 = vmax.f32 %v178, 0.0
    %v243 = vmax.f32 %v179, 0.0
    %v244 = vmax.f32 %v180, 0.0
    %v245 = vmax.f32 %v181, 0.0
    %v246 = vmax.f32 %v182, 0.0
    %v247 = vmax.f32 %v183, 0.0
    %v248 = vmax.f32 %v184, 0.0
    %v249 = vmax.f32 %v185, 0.0
    %v250 = vmax.f32 %v186, 0.0
    %v251 = vmax.f32 %v187, 0.0
    %v252 = vmax.f32 %v188, 0.0
    %v253 = vmax.f32 %v189, 0.0
    %v254 = vmax.f32 %v190, 0.0
    %v255 = vmax.f32 %v191, 0.0
    %v256 = vmax.f32 %v192, 0.0
    %v257 = vmax.f32 %v193, 0.0
    %v258 = vmax.f32 %v194, 0.0
    %v259 = vmax.f32 %v195, 0.0
    %v260 = vmax.f32 %v196, 0.0
    %v261 = vmax.f32 %v197, 0.0
    %v262 = vmax.f32 %v198, 0.0
    %v263 = vmax.f32 %v199, 0.0
    %v264 = vmax.f32 %v200, 0.0
    %v265 = vmax.f32 %v201, 0.0
    %v266 = vmax.f32 %v202, 0.0
    %v267 = vmax.f32 %v203, 0.0
    %v268 = vmax.f32 %v204, 0.0
    %v269 = vmax.f32 %v205, 0.0
    %v270 = vmax.f32 %v206, 0.0
    %v271 = vmax.f32 %v207, 0.0
    %v272 = vmax.f32 %v208, 0.0
    %v273 = vmax.f32 %v209, 0.0
    %v274 = vmax.f32 %v210, 0.0
    %v275 = vmax.f32 %v211, 0.0
    %v276 = vmax.f32 %v212, 0.0
    %v277 = vmax.f32 %v213, 0.0
    %v278 = vmax.f32 %v214, 0.0
    %v279 = vmax.f32 %v215, 0.0
    %v280 = vmax.f32 %v216, 0.0
    %v281 = vmax.f32 %v217, 0.0
    %v282 = vmax.f32 %v218, 0.0
    %v283 = vmax.f32 %v219, 0.0
    %v284 = vmax.f32 %v220, 0.0
    %v285 = vpack.c.bf16 %v222, %v221
    %v286 = vpack.c.bf16 %v224, %v223
    %v287 = vpack.c.bf16 %v226, %v225
    %v288 = vpack.c.bf16 %v228, %v227
    %v289 = vpack.c.bf16 %v230, %v229
    %v290 = vpack.c.bf16 %v232, %v231
    %v291 = vpack.c.bf16 %v234, %v233
    %v292 = vpack.c.bf16 %v236, %v235
    %v293 = vpack.c.bf16 %v238, %v237
    %v294 = vpack.c.bf16 %v240, %v239
    %v295 = vpack.c.bf16 %v242, %v241
    %v296 = vpack.c.bf16 %v244, %v243
    %v297 = vpack.c.bf16 %v246, %v245
    %v298 = vpack.c.bf16 %v248, %v247
    %v299 = vpack.c.bf16 %v250, %v249
    %v300 = vpack.c.bf16 %v252, %v251
    %v301 = vpack.c.bf16 %v254, %v253
    %v302 = vpack.c.bf16 %v256, %v255
    %v303 = vpack.c.bf16 %v258, %v257
    %v304 = vpack.c.bf16 %v260, %v259
    %v305 = vpack.c.bf16 %v262, %v261
    %v306 = vpack.c.bf16 %v264, %v263
    %v307 = vpack.c.bf16 %v266, %v265
    %v308 = vpack.c.bf16 %v268, %v267
    %v309 = vpack.c.bf16 %v270, %v269
    %v310 = vpack.c.bf16 %v272, %v271
    %v311 = vpack.c.bf16 %v274, %v273
    %v312 = vpack.c.bf16 %v276, %v275
    %v313 = vpack.c.bf16 %v278, %v277
    %v314 = vpack.c.bf16 %v280, %v279
    %v315 = vpack.c.bf16 %v282, %v281
    %v316 = vpack.c.bf16 %v284, %v283
    %v349 = vunpack.c.l.b16 %v285
    %v350 = vunpack.c.h.b16 %v285
    %v351 = vunpack.c.l.b16 %v286
    %v352 = vunpack.c.h.b16 %v286
    %v353 = vunpack.c.l.b16 %v287
    %v354 = vunpack.c.h.b16 %v287
    %v355 = vunpack.c.l.b16 %v288
    %v356 = vunpack.c.h.b16 %v288
    %v357 = vunpack.c.l.b16 %v289
    %v358 = vunpack.c.h.b16 %v289
    %v359 = vunpack.c.l.b16 %v290
    %v360 = vunpack.c.h.b16 %v290
    %v361 = vunpack.c.l.b16 %v291
    %v362 = vunpack.c.h.b16 %v291
    %v363 = vunpack.c.l.b16 %v292
    %v364 = vunpack.c.h.b16 %v292
    %v365 = vunpack.c.l.b16 %v293
    %v366 = vunpack.c.h.b16 %v293
    %v367 = vunpack.c.l.b16 %v294
    %v368 = vunpack.c.h.b16 %v294
    %v369 = vunpack.c.l.b16 %v295
    %v370 = vunpack.c.h.b16 %v295
    %v371 = vunpack.c.l.b16 %v296
    %v372 = vunpack.c.h.b16 %v296
    %v373 = vunpack.c.l.b16 %v297
    %v374 = vunpack.c.h.b16 %v297
    %v375 = vunpack.c.l.b16 %v298
    %v376 = vunpack.c.h.b16 %v298
    %v377 = vunpack.c.l.b16 %v299
    %v378 = vunpack.c.h.b16 %v299
    %v379 = vunpack.c.l.b16 %v300
    %v380 = vunpack.c.h.b16 %v300
    %v381 = vunpack.c.l.b16 %v301
    %v382 = vunpack.c.h.b16 %v301
    %v383 = vunpack.c.l.b16 %v302
    %v384 = vunpack.c.h.b16 %v302
    %v385 = vunpack.c.l.b16 %v303
    %v386 = vunpack.c.h.b16 %v303
    %v387 = vunpack.c.l.b16 %v304
    %v388 = vunpack.c.h.b16 %v304
    %v389 = vunpack.c.l.b16 %v305
    %v390 = vunpack.c.h.b16 %v305
    %v391 = vunpack.c.l.b16 %v306
    %v392 = vunpack.c.h.b16 %v306
    %v393 = vunpack.c.l.b16 %v307
    %v394 = vunpack.c.h.b16 %v307
    %v395 = vunpack.c.l.b16 %v308
    %v396 = vunpack.c.h.b16 %v308
    %v397 = vunpack.c.l.b16 %v309
    %v398 = vunpack.c.h.b16 %v309
    %v399 = vunpack.c.l.b16 %v310
    %v400 = vunpack.c.h.b16 %v310
    %v401 = vunpack.c.l.b16 %v311
    %v402 = vunpack.c.h.b16 %v311
    %v403 = vunpack.c.l.b16 %v312
    %v404 = vunpack.c.h.b16 %v312
    %v405 = vunpack.c.l.b16 %v313
    %v406 = vunpack.c.h.b16 %v313
    %v407 = vunpack.c.l.b16 %v314
    %v408 = vunpack.c.h.b16 %v314
    %v409 = vunpack.c.l.b16 %v315
    %v410 = vunpack.c.h.b16 %v315
    %v411 = vunpack.c.l.b16 %v316
    %v412 = vunpack.c.h.b16 %v316
    %v413 = vpack.c.b16 %v349, %v349
    %v414 = vpack.c.b16 %v350, %v350
    %v415 = vpack.c.b16 %v351, %v351
    %v416 = vpack.c.b16 %v352, %v352
    %v417 = vpack.c.b16 %v353, %v353
    %v418 = vpack.c.b16 %v354, %v354
    %v419 = vpack.c.b16 %v355, %v355
    %v420 = vpack.c.b16 %v356, %v356
    %v421 = vpack.c.b16 %v357, %v357
    %v422 = vpack.c.b16 %v358, %v358
    %v423 = vpack.c.b16 %v359, %v359
    %v424 = vpack.c.b16 %v360, %v360
    %v425 = vpack.c.b16 %v361, %v361
    %v426 = vpack.c.b16 %v362, %v362
    %v427 = vpack.c.b16 %v363, %v363
    %v428 = vpack.c.b16 %v364, %v364
    %v429 = vpack.c.b16 %v365, %v365
    %v430 = vpack.c.b16 %v366, %v366
    %v431 = vpack.c.b16 %v367, %v367
    %v432 = vpack.c.b16 %v368, %v368
    %v433 = vpack.c.b16 %v369, %v369
    %v434 = vpack.c.b16 %v370, %v370
    %v435 = vpack.c.b16 %v371, %v371
    %v436 = vpack.c.b16 %v372, %v372
    %v437 = vpack.c.b16 %v373, %v373
    %v438 = vpack.c.b16 %v374, %v374
    %v439 = vpack.c.b16 %v375, %v375
    %v440 = vpack.c.b16 %v376, %v376
    %v441 = vpack.c.b16 %v377, %v377
    %v442 = vpack.c.b16 %v378, %v378
    %v443 = vpack.c.b16 %v379, %v379
    %v444 = vpack.c.b16 %v380, %v380
    %v445 = vpack.c.b16 %v381, %v381
    %v446 = vpack.c.b16 %v382, %v382
    %v447 = vpack.c.b16 %v383, %v383
    %v448 = vpack.c.b16 %v384, %v384
    %v449 = vpack.c.b16 %v385, %v385
    %v450 = vpack.c.b16 %v386, %v386
    %v451 = vpack.c.b16 %v387, %v387
    %v452 = vpack.c.b16 %v388, %v388
    %v453 = vpack.c.b16 %v389, %v389
    %v454 = vpack.c.b16 %v390, %v390
    %v455 = vpack.c.b16 %v391, %v391
    %v456 = vpack.c.b16 %v392, %v392
    %v457 = vpack.c.b16 %v393, %v393
    %v458 = vpack.c.b16 %v394, %v394
    %v459 = vpack.c.b16 %v395, %v395
    %v460 = vpack.c.b16 %v396, %v396
    %v461 = vpack.c.b16 %v397, %v397
    %v462 = vpack.c.b16 %v398, %v398
    %v463 = vpack.c.b16 %v399, %v399
    %v464 = vpack.c.b16 %v400, %v400
    %v465 = vpack.c.b16 %v401, %v401
    %v466 = vpack.c.b16 %v402, %v402
    %v467 = vpack.c.b16 %v403, %v403
    %v468 = vpack.c.b16 %v404, %v404
    %v469 = vpack.c.b16 %v405, %v405
    %v470 = vpack.c.b16 %v406, %v406
    %v471 = vpack.c.b16 %v407, %v407
    %v472 = vpack.c.b16 %v408, %v408
    %v473 = vpack.c.b16 %v409, %v409
    %v474 = vpack.c.b16 %v410, %v410
    %v475 = vpack.c.b16 %v411, %v411
    %v476 = vpack.c.b16 %v412, %v412
    %541 = vst [vmem:[#allocation2] sm:$0xf] %v413
    %542 = vst [vmem:[#allocation2 + $0x4] sm:$0xf] %v414
    %543 = vst [vmem:[#allocation2 + $0x8] sm:$0xf] %v415
    %544 = vst [vmem:[#allocation2 + $0xc] sm:$0xf] %v416
    %545 = vst [vmem:[#allocation2 + $0x10] sm:$0xf] %v417
    %546 = vst [vmem:[#allocation2 + $0x14] sm:$0xf] %v418
    %547 = vst [vmem:[#allocation2 + $0x18] sm:$0xf] %v419
    %548 = vst [vmem:[#allocation2 + $0x1c] sm:$0xf] %v420
    %549 = vst [vmem:[#allocation2 + $0x20] sm:$0xf] %v421
    %550 = vst [vmem:[#allocation2 + $0x24] sm:$0xf] %v422
    %551 = vst [vmem:[#allocation2 + $0x28] sm:$0xf] %v423
    %552 = vst [vmem:[#allocation2 + $0x2c] sm:$0xf] %v424
    %553 = vst [vmem:[#allocation2 + $0x30] sm:$0xf] %v425
    %554 = vst [vmem:[#allocation2 + $0x34] sm:$0xf] %v426
    %555 = vst [vmem:[#allocation2 + $0x38] sm:$0xf] %v427
    %556 = vst [vmem:[#allocation2 + $0x3c] sm:$0xf] %v428
    %557 = vst [vmem:[#allocation2 + $0x40] sm:$0xf] %v429
    %558 = vst [vmem:[#allocation2 + $0x44] sm:$0xf] %v430
    %559 = vst [vmem:[#allocation2 + $0x48] sm:$0xf] %v431
    %560 = vst [vmem:[#allocation2 + $0x4c] sm:$0xf] %v432
    %561 = vst [vmem:[#allocation2 + $0x50] sm:$0xf] %v433
    %562 = vst [vmem:[#allocation2 + $0x54] sm:$0xf] %v434
    %563 = vst [vmem:[#allocation2 + $0x58] sm:$0xf] %v435
    %564 = vst [vmem:[#allocation2 + $0x5c] sm:$0xf] %v436
    %565 = vst [vmem:[#allocation2 + $0x60] sm:$0xf] %v437
    %566 = vst [vmem:[#allocation2 + $0x64] sm:$0xf] %v438
    %567 = vst [vmem:[#allocation2 + $0x68] sm:$0xf] %v439
    %568 = vst [vmem:[#allocation2 + $0x6c] sm:$0xf] %v440
    %569 = vst [vmem:[#allocation2 + $0x70] sm:$0xf] %v441
    %570 = vst [vmem:[#allocation2 + $0x74] sm:$0xf] %v442
    %571 = vst [vmem:[#allocation2 + $0x78] sm:$0xf] %v443
    %572 = vst [vmem:[#allocation2 + $0x7c] sm:$0xf] %v444
    %573 = vst [vmem:[#allocation2 + $0x80] sm:$0xf] %v445
    %574 = vst [vmem:[#allocation2 + $0x84] sm:$0xf] %v446
    %575 = vst [vmem:[#allocation2 + $0x88] sm:$0xf] %v447
    %576 = vst [vmem:[#allocation2 + $0x8c] sm:$0xf] %v448
    %577 = vst [vmem:[#allocation2 + $0x90] sm:$0xf] %v449
    %578 = vst [vmem:[#allocation2 + $0x94] sm:$0xf] %v450
    %579 = vst [vmem:[#allocation2 + $0x98] sm:$0xf] %v451
    %580 = vst [vmem:[#allocation2 + $0x9c] sm:$0xf] %v452
    %581 = vst [vmem:[#allocation2 + $0xa0] sm:$0xf] %v453
    %582 = vst [vmem:[#allocation2 + $0xa4] sm:$0xf] %v454
    %583 = vst [vmem:[#allocation2 + $0xa8] sm:$0xf] %v455
    %584 = vst [vmem:[#allocation2 + $0xac] sm:$0xf] %v456
    %585 = vst [vmem:[#allocation2 + $0xb0] sm:$0xf] %v457
    %586 = vst [vmem:[#allocation2 + $0xb4] sm:$0xf] %v458
    %587 = vst [vmem:[#allocation2 + $0xb8] sm:$0xf] %v459
    %588 = vst [vmem:[#allocation2 + $0xbc] sm:$0xf] %v460
    %589 = vst [vmem:[#allocation2 + $0xc0] sm:$0xf] %v461
    %590 = vst [vmem:[#allocation2 + $0xc4] sm:$0xf] %v462
    %591 = vst [vmem:[#allocation2 + $0xc8] sm:$0xf] %v463
    %592 = vst [vmem:[#allocation2 + $0xcc] sm:$0xf] %v464
    %593 = vst [vmem:[#allocation2 + $0xd0] sm:$0xf] %v465
    %594 = vst [vmem:[#allocation2 + $0xd4] sm:$0xf] %v466
    %595 = vst [vmem:[#allocation2 + $0xd8] sm:$0xf] %v467
    %596 = vst [vmem:[#allocation2 + $0xdc] sm:$0xf] %v468
    %597 = vst [vmem:[#allocation2 + $0xe0] sm:$0xf] %v469
    %598 = vst [vmem:[#allocation2 + $0xe4] sm:$0xf] %v470
    %599 = vst [vmem:[#allocation2 + $0xe8] sm:$0xf] %v471
    %600 = vst [vmem:[#allocation2 + $0xec] sm:$0xf] %v472
    %601 = vst [vmem:[#allocation2 + $0xf0] sm:$0xf] %v473
    %602 = vst [vmem:[#allocation2 + $0xf4] sm:$0xf] %v474
    %603 = vst [vmem:[#allocation2 + $0xf8] sm:$0xf] %v475
    %604 = vst [vmem:[#allocation2 + $0xfc] sm:$0xf] %v476
    // Predicated region
    $region14: #{_conv_bn.3} parent=1 // pred_check
      _
    $region15: #{_conv_bn.3} parent=1 // pred_check_branch
      %606 = sbr.rel (0) target = $region17
    $region16: #{_conv_bn.3} parent=1 // pred_region
      %s608 = ssub.s32 4096, 4096
      %609 = vsyncadd [#allocation3], %s608
      %s610 = sshll.u32 [#allocation2], 4
      %s611 = int_to_ptr.vmem [resolvable:$true] %s610
      %616 = dma.vmem_to_hbm [thread:$0]  %s611, 4096, %s3, [#allocation3], 64, 64, 4
    $region17: #{_conv_bn.3} parent=1 // pred_fallthru
      _
    // Predicated region
    $region18: #{_conv_bn.3} parent=1 // pred_check
      _
    $region19: #{_conv_bn.3} parent=1 // pred_check_branch
      %618 = sbr.rel (0) target = $region21
    $region20: #{_conv_bn.3} parent=1 // pred_region
      %619 = dma.done [#allocation3], 4096
    $region21: #{_conv_bn.3} parent=1 // pred_fallthru
      _
    %620 = vsyncpa [#allocation3], 1

</llo_original>
